<compile_context>
chip_gen: v5e
topology: v5e:2x2
jax: 0.10.0
libtpu: 0.0.40
codegen_flags: <defaults>
</compile_context>

<pallas_src>
import functools

import jax
import jax.numpy as jnp
import numpy as np
from jax.experimental import pallas as pl
from jax.experimental.pallas import tpu as pltpu


def _largest_divisor_leq(n, cap):
    cap = max(1, min(cap, n))
    for d in range(cap, 0, -1):
        if n % d == 0:
            return d
    return 1


# --------------------- fused LSTM + cosine-sim + Linear kernel ---------------------
def _fused_lstm_kernel(x_ref, wih_ref, whh_ref, b_ref, wout_ref, bout_ref,
                       out_ref, h_scr, c_scr, *,
                       t_chunk, batch, n_node, hidden, mm_dtype):
    c_idx = pl.program_id(0)
    n_rows = h_scr.shape[0]          # N = batch * n_node
    in_dim = x_ref.shape[2]
    H = hidden

    @pl.when(c_idx == 0)
    def _init():
        h_scr[...] = jnp.zeros_like(h_scr)
        c_scr[...] = jnp.zeros_like(c_scr)

    # ---- Phase 1: hoisted input projection for the whole chunk -------------
    # One big MXU matmul (t_chunk*N, D) x (D, 4H) instead of t_chunk tiny ones.
    x_chunk = x_ref[...].reshape(t_chunk * n_rows, in_dim)
    g_big = jnp.dot(x_chunk, wih_ref[...],
                    preferred_element_type=jnp.float32) + b_ref[...]
    # Split per gate (i, f, g, o) ONCE per chunk; the hot loop below only does
    # leading-axis / row (sublane) slicing.
    g_gate = [g_big[:, k * H:(k + 1) * H] for k in range(4)]

    whh = whh_ref[...]               # (4, H, H): W_hh_k^T stacked per gate

    # ---- Phase 2: serial recurrence over the chunk --------------------------
    h = h_scr[...]
    c = c_scr[...]
    for t in range(t_chunk):         # short static unroll
        h_mm = h.astype(mm_dtype)
        r0 = t * n_rows
        pre = [g_gate[k][r0:r0 + n_rows, :]
               + jnp.dot(h_mm, whh[k], preferred_element_type=jnp.float32)
               for k in range(4)]
        i_g = jax.nn.sigmoid(pre[0])
        f_g = jax.nn.sigmoid(pre[1])
        g_g = jnp.tanh(pre[2])
        o_g = jax.nn.sigmoid(pre[3])
        c = f_g * c + i_g * g_g
        h = o_g * jnp.tanh(c)

    h_scr[...] = h
    c_scr[...] = c

    # ---- Phase 3: fused epilogue at the last time chunk ---------------------
    @pl.when(c_idx == pl.num_programs(0) - 1)
    def _epilogue():
        wout = wout_ref[...]
        bout = bout_ref[...]
        for b in range(batch):
            hb = h[b * n_node:(b + 1) * n_node, :]            # row slice
            nrm = jnp.sqrt(jnp.sum(hb * hb, axis=1, keepdims=True))
            hn = hb / jnp.maximum(nrm, 1e-8)
            # contract last dims of both operands -> no explicit transpose
            sim = jax.lax.dot_general(hn, hn, (((1,), (1,)), ((), ())),
                                      preferred_element_type=jnp.float32)
            y = jnp.dot(sim, wout, preferred_element_type=jnp.float32) + bout
            out_ref[b, :, :] = jax.nn.sigmoid(y).astype(out_ref.dtype)


def lstm_link_prediction_forward(prop_state, params, *, t_chunk=8,
                                 mm_dtype=jnp.float32):
    """prop_state: (B, L, n_node, state_dim). Returns (B, n_node, output_dim)."""
    B, L, n_node, D = prop_state.shape
    H = params["w_hh"].shape[1]
    O = params["w_out"].shape[0]
    assert n_node == O, "module applies Linear(output_dim, output_dim) to an (n_node, n_node) sim matrix"
    N = B * n_node
    tc = _largest_divisor_leq(L, t_chunk)

    # torch .view semantics == row-major reinterpretation of the contiguous tensor
    x = prop_state.reshape(N, L, D)
    x_tm = jnp.transpose(x, (1, 0, 2)).astype(mm_dtype)       # (L, N, D) time-major

    wih_t = params["w_ih"].T.astype(mm_dtype)                 # (D, 4H)
    # per-gate recurrent weights, transposed: whh_t[k] = W_hh[kH:(k+1)H, :]^T
    whh_t = params["w_hh"].reshape(4, H, H).transpose(0, 2, 1).astype(mm_dtype)
    bias = (params["b_ih"] + params["b_hh"]).astype(jnp.float32).reshape(1, 4 * H)
    wout_t = params["w_out"].T.astype(jnp.float32)            # (O, O)
    bout = params["b_out"].astype(jnp.float32).reshape(1, O)

    kernel = functools.partial(
        _fused_lstm_kernel, t_chunk=tc, batch=B, n_node=n_node,
        hidden=H, mm_dtype=mm_dtype)

    return pl.pallas_call(
        kernel,
        out_shape=jax.ShapeDtypeStruct((B, n_node, O), jnp.float32),
        grid_spec=pltpu.PrefetchScalarGridSpec(
            num_scalar_prefetch=0,
            grid=(L // tc,),
            in_specs=[
                pl.BlockSpec((tc, N, D), lambda c: (c, 0, 0)),    # x time chunk
                pl.BlockSpec((D, 4 * H), lambda c: (0, 0)),       # W_ih^T
                pl.BlockSpec((4, H, H), lambda c: (0, 0, 0)),     # W_hh_k^T stack
                pl.BlockSpec((1, 4 * H), lambda c: (0, 0)),       # b_ih + b_hh
                pl.BlockSpec((O, O), lambda c: (0, 0)),           # W_out^T
                pl.BlockSpec((1, O), lambda c: (0, 0)),           # b_out
            ],
            out_specs=pl.BlockSpec((B, n_node, O), lambda c: (0, 0, 0)),
            scratch_shapes=[pltpu.VMEM((N, H), jnp.float32),      # h
                            pltpu.VMEM((N, H), jnp.float32)],     # c
        ),
        compiler_params=pltpu.CompilerParams(
            dimension_semantics=("arbitrary",),
            vmem_limit_bytes=32 * 1024 * 1024,
        ),
    )(x_tm, wih_t, whh_t, bias, wout_t, bout)


# ------------------------------ pure-JAX reference ------------------------------
def reference_forward(prop_state, params):
    B, L, n_node, D = prop_state.shape
    H = params["w_hh"].shape[1]
    x = prop_state.reshape(B * n_node, L, D)

    def step(carry, x_t):
        h, c = carry
        gates = (x_t @ params["w_ih"].T + h @ params["w_hh"].T
                 + params["b_ih"] + params["b_hh"])
        i, f, g, o = jnp.split(gates, 4, axis=-1)
        c = jax.nn.sigmoid(f) * c + jax.nn.sigmoid(i) * jnp.tanh(g)
        h = jax.nn.sigmoid(o) * jnp.tanh(c)
        return (h, c), None

    h0 = jnp.zeros((B * n_node, H), jnp.float32)
    (h_n, _), _ = jax.lax.scan(step, (h0, h0), jnp.transpose(x, (1, 0, 2)))
    h_bnh = h_n.reshape(B, n_node, H)

    def per_batch(hb):
        nrm = jnp.maximum(jnp.linalg.norm(hb, axis=1, keepdims=True), 1e-8)
        hn = hb / nrm
        sim = hn @ hn.T
        return jax.nn.sigmoid(sim @ params["w_out"].T + params["b_out"])

    return jax.vmap(per_batch)(h_bnh)


if __name__ == "__main__":
    # small shapes consistent with the module (n_node must equal output_dim)
    B, L, n_node, state_dim, hidden_dim = 2, 8, 8, 16, 32
    output_dim = n_node

    key = jax.random.PRNGKey(0)
    ks = jax.random.split(key, 6)
    bound = 1.0 / np.sqrt(hidden_dim)
    params = {
        # nn.LSTM default init: U(-1/sqrt(H), 1/sqrt(H)), gate order i,f,g,o
        "w_ih": jax.random.uniform(ks[0], (4 * hidden_dim, state_dim),
                                   jnp.float32, -bound, bound),
        "w_hh": jax.random.uniform(ks[1], (4 * hidden_dim, hidden_dim),
                                   jnp.float32, -bound, bound),
        "b_ih": jax.random.uniform(ks[2], (4 * hidden_dim,),
                                   jnp.float32, -bound, bound),
        "b_hh": jax.random.uniform(ks[3], (4 * hidden_dim,),
                                   jnp.float32, -bound, bound),
        # Linear: weight ~ N(0, 0.02), bias = 0 (per _initialization)
        "w_out": 0.02 * jax.random.normal(ks[4], (output_dim, output_dim),
                                          jnp.float32),
        "b_out": jnp.zeros((output_dim,), jnp.float32),
    }
    prop_state = jax.random.normal(ks[5], (B, L, n_node, state_dim),
                                   jnp.float32)

    ref = reference_forward(prop_state, params)

    # f32 path with two time chunks (exercises h/c carry across grid steps)
    out_f32 = jax.block_until_ready(
        lstm_link_prediction_forward(prop_state, params, t_chunk=4,
                                     mm_dtype=jnp.float32))
    np.testing.assert_allclose(np.asarray(out_f32), np.asarray(ref),
                               atol=5e-4, rtol=5e-4)

    # bf16 matmul operands (f32 accumulation / f32 elementwise), single chunk
    out_bf16 = jax.block_until_ready(
        lstm_link_prediction_forward(prop_state, params, t_chunk=8,
                                     mm_dtype=jnp.bfloat16))
    np.testing.assert_allclose(np.asarray(out_bf16), np.asarray(ref),
                               atol=3e-2, rtol=3e-2)

    assert out_f32.shape == (B, n_node, output_dim)
    print("KERNEL_OK")
</pallas_src>

<mosaic_0001>
module attributes {stable_mosaic.version = 11 : i64} {
  func.func @_fused_lstm_kernel(%arg0: i32, %arg1: memref<4x16x16xf32, #tpu.memory_space<vmem>>, %arg2: memref<16x128xf32, #tpu.memory_space<vmem>>, %arg3: memref<4x32x32xf32, #tpu.memory_space<vmem>>, %arg4: memref<1x128xf32, #tpu.memory_space<vmem>>, %arg5: memref<8x8xf32, #tpu.memory_space<vmem>>, %arg6: memref<1x8xf32, #tpu.memory_space<vmem>>, %arg7: memref<2x8x8xf32, #tpu.memory_space<vmem>>, %arg8: memref<16x32xf32, #tpu.memory_space<vmem>>, %arg9: memref<16x32xf32, #tpu.memory_space<vmem>>) attributes {dimension_semantics = [#tpu.dimension_semantics<arbitrary>], iteration_bounds = array<i64: 2>, scalar_prefetch = 0 : i64, scratch_operands = 2 : i64, tpu.core_type = #tpu.core_type<tc>, window_params = [{transform_indices = @transform_0, window_bounds = array<i64: 4, 16, 16>}, {pipeline_mode = #tpu.pipeline_mode<synchronous>, transform_indices = @transform_1, window_bounds = array<i64: 16, 128>}, {pipeline_mode = #tpu.pipeline_mode<synchronous>, transform_indices = @transform_2, window_bounds = array<i64: 4, 32, 32>}, {pipeline_mode = #tpu.pipeline_mode<synchronous>, transform_indices = @transform_3, window_bounds = array<i64: 1, 128>}, {pipeline_mode = #tpu.pipeline_mode<synchronous>, transform_indices = @transform_4, window_bounds = array<i64: 8, 8>}, {pipeline_mode = #tpu.pipeline_mode<synchronous>, transform_indices = @transform_5, window_bounds = array<i64: 1, 8>}, {pipeline_mode = #tpu.pipeline_mode<synchronous>, transform_indices = @transform_6, window_bounds = array<i64: 2, 8, 8>}]} {
    %c0_i32 = arith.constant 0 : i32
    %0 = arith.cmpi eq, %arg0, %c0_i32 : i32
    %1 = arith.extui %0 : i1 to i32
    %c0_i32_0 = arith.constant 0 : i32
    %2 = arith.cmpi ne, %1, %c0_i32_0 : i32
    scf.if %2 {
      %cst_47 = arith.constant 0.000000e+00 : f32
      %186 = vector.broadcast %cst_47 : f32 to vector<16x32xf32>
      %c0_48 = arith.constant 0 : index
      %c0_49 = arith.constant 0 : index
      %187 = vector.load %arg8[%c0_48, %c0_49] : memref<16x32xf32, #tpu.memory_space<vmem>>, vector<16x32xf32>
      tpu.vector_store %arg8[%c0_48, %c0_49], %186 {strides = array<i32>} : memref<16x32xf32, #tpu.memory_space<vmem>>, vector<16x32xf32>,
      %cst_50 = arith.constant 0.000000e+00 : f32
      %188 = vector.broadcast %cst_50 : f32 to vector<16x32xf32>
      %c0_51 = arith.constant 0 : index
      %c0_52 = arith.constant 0 : index
      %189 = vector.load %arg9[%c0_51, %c0_52] : memref<16x32xf32, #tpu.memory_space<vmem>>, vector<16x32xf32>
      tpu.vector_store %arg9[%c0_51, %c0_52], %188 {strides = array<i32>} : memref<16x32xf32, #tpu.memory_space<vmem>>, vector<16x32xf32>,
    } else {
    }
    %c0 = arith.constant 0 : index
    %c0_1 = arith.constant 0 : index
    %c0_2 = arith.constant 0 : index
    %3 = vector.load %arg1[%c0, %c0_1, %c0_2] : memref<4x16x16xf32, #tpu.memory_space<vmem>>, vector<4x16x16xf32>
    %4 = vector.shape_cast %3 : vector<4x16x16xf32> to vector<64x16xf32>
    %c0_3 = arith.constant 0 : index
    %c0_4 = arith.constant 0 : index
    %5 = vector.load %arg2[%c0_3, %c0_4] : memref<16x128xf32, #tpu.memory_space<vmem>>, vector<16x128xf32>
    %cst = arith.constant dense<0.000000e+00> : vector<64x128xf32>
    %6 = tpu.matmul %4, %5, %cst {dimension_numbers = #tpu.dot_dimension_numbers<[1], [0], [0], [1], [0, 0, 1, 1], [], []>} : vector<64x16xf32>, vector<16x128xf32>, vector<64x128xf32> -> vector<64x128xf32>
    %c0_5 = arith.constant 0 : index
    %c0_6 = arith.constant 0 : index
    %7 = vector.load %arg4[%c0_5, %c0_6] : memref<1x128xf32, #tpu.memory_space<vmem>>, vector<1x128xf32>
    %8 = vector.broadcast %7 : vector<1x128xf32> to vector<64x128xf32>
    %9 = arith.addf %6, %8 : vector<64x128xf32>
    %10 = vector.extract_strided_slice %9 {offsets = [0, 0], sizes = [64, 32], strides = [1, 1]} : vector<64x128xf32> to vector<64x32xf32>
    %11 = vector.extract_strided_slice %9 {offsets = [0, 32], sizes = [64, 32], strides = [1, 1]} : vector<64x128xf32> to vector<64x32xf32>
    %12 = vector.extract_strided_slice %9 {offsets = [0, 64], sizes = [64, 32], strides = [1, 1]} : vector<64x128xf32> to vector<64x32xf32>
    %13 = vector.extract_strided_slice %9 {offsets = [0, 96], sizes = [64, 32], strides = [1, 1]} : vector<64x128xf32> to vector<64x32xf32>
    %c0_7 = arith.constant 0 : index
    %c0_8 = arith.constant 0 : index
    %c0_9 = arith.constant 0 : index
    %14 = vector.load %arg3[%c0_7, %c0_8, %c0_9] : memref<4x32x32xf32, #tpu.memory_space<vmem>>, vector<4x32x32xf32>
    %c0_10 = arith.constant 0 : index
    %c0_11 = arith.constant 0 : index
    %15 = vector.load %arg8[%c0_10, %c0_11] : memref<16x32xf32, #tpu.memory_space<vmem>>, vector<16x32xf32>
    %c0_12 = arith.constant 0 : index
    %c0_13 = arith.constant 0 : index
    %16 = vector.load %arg9[%c0_12, %c0_13] : memref<16x32xf32, #tpu.memory_space<vmem>>, vector<16x32xf32>
    %17 = vector.extract_strided_slice %10 {offsets = [0, 0], sizes = [16, 32], strides = [1, 1]} : vector<64x32xf32> to vector<16x32xf32>
    %18 = vector.extract_strided_slice %14 {offsets = [0, 0, 0], sizes = [1, 32, 32], strides = [1, 1, 1]} : vector<4x32x32xf32> to vector<1x32x32xf32>
    %19 = vector.shape_cast %18 : vector<1x32x32xf32> to vector<32x32xf32>
    %cst_14 = arith.constant dense<0.000000e+00> : vector<16x32xf32>
    %20 = tpu.matmul %15, %19, %cst_14 {dimension_numbers = #tpu.dot_dimension_numbers<[1], [0], [0], [1], [0, 0, 1, 1], [], []>} : vector<16x32xf32>, vector<32x32xf32>, vector<16x32xf32> -> vector<16x32xf32>
    %21 = arith.addf %17, %20 : vector<16x32xf32>
    %22 = vector.extract_strided_slice %11 {offsets = [0, 0], sizes = [16, 32], strides = [1, 1]} : vector<64x32xf32> to vector<16x32xf32>
    %23 = vector.extract_strided_slice %14 {offsets = [1, 0, 0], sizes = [1, 32, 32], strides = [1, 1, 1]} : vector<4x32x32xf32> to vector<1x32x32xf32>
    %24 = vector.shape_cast %23 : vector<1x32x32xf32> to vector<32x32xf32>
    %cst_15 = arith.constant dense<0.000000e+00> : vector<16x32xf32>
    %25 = tpu.matmul %15, %24, %cst_15 {dimension_numbers = #tpu.dot_dimension_numbers<[1], [0], [0], [1], [0, 0, 1, 1], [], []>} : vector<16x32xf32>, vector<32x32xf32>, vector<16x32xf32> -> vector<16x32xf32>
    %26 = arith.addf %22, %25 : vector<16x32xf32>
    %27 = vector.extract_strided_slice %12 {offsets = [0, 0], sizes = [16, 32], strides = [1, 1]} : vector<64x32xf32> to vector<16x32xf32>
    %28 = vector.extract_strided_slice %14 {offsets = [2, 0, 0], sizes = [1, 32, 32], strides = [1, 1, 1]} : vector<4x32x32xf32> to vector<1x32x32xf32>
    %29 = vector.shape_cast %28 : vector<1x32x32xf32> to vector<32x32xf32>
    %cst_16 = arith.constant dense<0.000000e+00> : vector<16x32xf32>
    %30 = tpu.matmul %15, %29, %cst_16 {dimension_numbers = #tpu.dot_dimension_numbers<[1], [0], [0], [1], [0, 0, 1, 1], [], []>} : vector<16x32xf32>, vector<32x32xf32>, vector<16x32xf32> -> vector<16x32xf32>
    %31 = arith.addf %27, %30 : vector<16x32xf32>
    %32 = vector.extract_strided_slice %13 {offsets = [0, 0], sizes = [16, 32], strides = [1, 1]} : vector<64x32xf32> to vector<16x32xf32>
    %33 = vector.extract_strided_slice %14 {offsets = [3, 0, 0], sizes = [1, 32, 32], strides = [1, 1, 1]} : vector<4x32x32xf32> to vector<1x32x32xf32>
    %34 = vector.shape_cast %33 : vector<1x32x32xf32> to vector<32x32xf32>
    %cst_17 = arith.constant dense<0.000000e+00> : vector<16x32xf32>
    %35 = tpu.matmul %15, %34, %cst_17 {dimension_numbers = #tpu.dot_dimension_numbers<[1], [0], [0], [1], [0, 0, 1, 1], [], []>} : vector<16x32xf32>, vector<32x32xf32>, vector<16x32xf32> -> vector<16x32xf32>
    %36 = arith.addf %32, %35 : vector<16x32xf32>
    %37 = arith.negf %21 : vector<16x32xf32>
    %38 = math.exp %37 : vector<16x32xf32>
    %cst_18 = arith.constant 1.000000e+00 : f32
    %39 = vector.broadcast %cst_18 : f32 to vector<16x32xf32>
    %40 = arith.addf %39, %38 : vector<16x32xf32>
    %41 = arith.divf %39, %40 : vector<16x32xf32>
    %42 = arith.negf %26 : vector<16x32xf32>
    %43 = math.exp %42 : vector<16x32xf32>
    %cst_19 = arith.constant 1.000000e+00 : f32
    %44 = vector.broadcast %cst_19 : f32 to vector<16x32xf32>
    %45 = arith.addf %44, %43 : vector<16x32xf32>
    %46 = arith.divf %44, %45 : vector<16x32xf32>
    %47 = math.tanh %31 : vector<16x32xf32>
    %48 = arith.negf %36 : vector<16x32xf32>
    %49 = math.exp %48 : vector<16x32xf32>
    %cst_20 = arith.constant 1.000000e+00 : f32
    %50 = vector.broadcast %cst_20 : f32 to vector<16x32xf32>
    %51 = arith.addf %50, %49 : vector<16x32xf32>
    %52 = arith.divf %50, %51 : vector<16x32xf32>
    %53 = arith.mulf %46, %16 : vector<16x32xf32>
    %54 = arith.mulf %41, %47 : vector<16x32xf32>
    %55 = arith.addf %53, %54 : vector<16x32xf32>
    %56 = math.tanh %55 : vector<16x32xf32>
    %57 = arith.mulf %52, %56 : vector<16x32xf32>
    %58 = vector.extract_strided_slice %10 {offsets = [16, 0], sizes = [16, 32], strides = [1, 1]} : vector<64x32xf32> to vector<16x32xf32>
    %59 = vector.extract_strided_slice %14 {offsets = [0, 0, 0], sizes = [1, 32, 32], strides = [1, 1, 1]} : vector<4x32x32xf32> to vector<1x32x32xf32>
    %60 = vector.shape_cast %59 : vector<1x32x32xf32> to vector<32x32xf32>
    %cst_21 = arith.constant dense<0.000000e+00> : vector<16x32xf32>
    %61 = tpu.matmul %57, %60, %cst_21 {dimension_numbers = #tpu.dot_dimension_numbers<[1], [0], [0], [1], [0, 0, 1, 1], [], []>} : vector<16x32xf32>, vector<32x32xf32>, vector<16x32xf32> -> vector<16x32xf32>
    %62 = arith.addf %58, %61 : vector<16x32xf32>
    %63 = vector.extract_strided_slice %11 {offsets = [16, 0], sizes = [16, 32], strides = [1, 1]} : vector<64x32xf32> to vector<16x32xf32>
    %64 = vector.extract_strided_slice %14 {offsets = [1, 0, 0], sizes = [1, 32, 32], strides = [1, 1, 1]} : vector<4x32x32xf32> to vector<1x32x32xf32>
    %65 = vector.shape_cast %64 : vector<1x32x32xf32> to vector<32x32xf32>
    %cst_22 = arith.constant dense<0.000000e+00> : vector<16x32xf32>
    %66 = tpu.matmul %57, %65, %cst_22 {dimension_numbers = #tpu.dot_dimension_numbers<[1], [0], [0], [1], [0, 0, 1, 1], [], []>} : vector<16x32xf32>, vector<32x32xf32>, vector<16x32xf32> -> vector<16x32xf32>
    %67 = arith.addf %63, %66 : vector<16x32xf32>
    %68 = vector.extract_strided_slice %12 {offsets = [16, 0], sizes = [16, 32], strides = [1, 1]} : vector<64x32xf32> to vector<16x32xf32>
    %69 = vector.extract_strided_slice %14 {offsets = [2, 0, 0], sizes = [1, 32, 32], strides = [1, 1, 1]} : vector<4x32x32xf32> to vector<1x32x32xf32>
    %70 = vector.shape_cast %69 : vector<1x32x32xf32> to vector<32x32xf32>
    %cst_23 = arith.constant dense<0.000000e+00> : vector<16x32xf32>
    %71 = tpu.matmul %57, %70, %cst_23 {dimension_numbers = #tpu.dot_dimension_numbers<[1], [0], [0], [1], [0, 0, 1, 1], [], []>} : vector<16x32xf32>, vector<32x32xf32>, vector<16x32xf32> -> vector<16x32xf32>
    %72 = arith.addf %68, %71 : vector<16x32xf32>
    %73 = vector.extract_strided_slice %13 {offsets = [16, 0], sizes = [16, 32], strides = [1, 1]} : vector<64x32xf32> to vector<16x32xf32>
    %74 = vector.extract_strided_slice %14 {offsets = [3, 0, 0], sizes = [1, 32, 32], strides = [1, 1, 1]} : vector<4x32x32xf32> to vector<1x32x32xf32>
    %75 = vector.shape_cast %74 : vector<1x32x32xf32> to vector<32x32xf32>
    %cst_24 = arith.constant dense<0.000000e+00> : vector<16x32xf32>
    %76 = tpu.matmul %57, %75, %cst_24 {dimension_numbers = #tpu.dot_dimension_numbers<[1], [0], [0], [1], [0, 0, 1, 1], [], []>} : vector<16x32xf32>, vector<32x32xf32>, vector<16x32xf32> -> vector<16x32xf32>
    %77 = arith.addf %73, %76 : vector<16x32xf32>
    %78 = arith.negf %62 : vector<16x32xf32>
    %79 = math.exp %78 : vector<16x32xf32>
    %cst_25 = arith.constant 1.000000e+00 : f32
    %80 = vector.broadcast %cst_25 : f32 to vector<16x32xf32>
    %81 = arith.addf %80, %79 : vector<16x32xf32>
    %82 = arith.divf %80, %81 : vector<16x32xf32>
    %83 = arith.negf %67 : vector<16x32xf32>
    %84 = math.exp %83 : vector<16x32xf32>
    %cst_26 = arith.constant 1.000000e+00 : f32
    %85 = vector.broadcast %cst_26 : f32 to vector<16x32xf32>
    %86 = arith.addf %85, %84 : vector<16x32xf32>
    %87 = arith.divf %85, %86 : vector<16x32xf32>
    %88 = math.tanh %72 : vector<16x32xf32>
    %89 = arith.negf %77 : vector<16x32xf32>
    %90 = math.exp %89 : vector<16x32xf32>
    %cst_27 = arith.constant 1.000000e+00 : f32
    %91 = vector.broadcast %cst_27 : f32 to vector<16x32xf32>
    %92 = arith.addf %91, %90 : vector<16x32xf32>
    %93 = arith.divf %91, %92 : vector<16x32xf32>
    %94 = arith.mulf %87, %55 : vector<16x32xf32>
    %95 = arith.mulf %82, %88 : vector<16x32xf32>
    %96 = arith.addf %94, %95 : vector<16x32xf32>
    %97 = math.tanh %96 : vector<16x32xf32>
    %98 = arith.mulf %93, %97 : vector<16x32xf32>
    %99 = vector.extract_strided_slice %10 {offsets = [32, 0], sizes = [16, 32], strides = [1, 1]} : vector<64x32xf32> to vector<16x32xf32>
    %100 = vector.extract_strided_slice %14 {offsets = [0, 0, 0], sizes = [1, 32, 32], strides = [1, 1, 1]} : vector<4x32x32xf32> to vector<1x32x32xf32>
    %101 = vector.shape_cast %100 : vector<1x32x32xf32> to vector<32x32xf32>
    %cst_28 = arith.constant dense<0.000000e+00> : vector<16x32xf32>
    %102 = tpu.matmul %98, %101, %cst_28 {dimension_numbers = #tpu.dot_dimension_numbers<[1], [0], [0], [1], [0, 0, 1, 1], [], []>} : vector<16x32xf32>, vector<32x32xf32>, vector<16x32xf32> -> vector<16x32xf32>
    %103 = arith.addf %99, %102 : vector<16x32xf32>
    %104 = vector.extract_strided_slice %11 {offsets = [32, 0], sizes = [16, 32], strides = [1, 1]} : vector<64x32xf32> to vector<16x32xf32>
    %105 = vector.extract_strided_slice %14 {offsets = [1, 0, 0], sizes = [1, 32, 32], strides = [1, 1, 1]} : vector<4x32x32xf32> to vector<1x32x32xf32>
    %106 = vector.shape_cast %105 : vector<1x32x32xf32> to vector<32x32xf32>
    %cst_29 = arith.constant dense<0.000000e+00> : vector<16x32xf32>
    %107 = tpu.matmul %98, %106, %cst_29 {dimension_numbers = #tpu.dot_dimension_numbers<[1], [0], [0], [1], [0, 0, 1, 1], [], []>} : vector<16x32xf32>, vector<32x32xf32>, vector<16x32xf32> -> vector<16x32xf32>
    %108 = arith.addf %104, %107 : vector<16x32xf32>
    %109 = vector.extract_strided_slice %12 {offsets = [32, 0], sizes = [16, 32], strides = [1, 1]} : vector<64x32xf32> to vector<16x32xf32>
    %110 = vector.extract_strided_slice %14 {offsets = [2, 0, 0], sizes = [1, 32, 32], strides = [1, 1, 1]} : vector<4x32x32xf32> to vector<1x32x32xf32>
    %111 = vector.shape_cast %110 : vector<1x32x32xf32> to vector<32x32xf32>
    %cst_30 = arith.constant dense<0.000000e+00> : vector<16x32xf32>
    %112 = tpu.matmul %98, %111, %cst_30 {dimension_numbers = #tpu.dot_dimension_numbers<[1], [0], [0], [1], [0, 0, 1, 1], [], []>} : vector<16x32xf32>, vector<32x32xf32>, vector<16x32xf32> -> vector<16x32xf32>
    %113 = arith.addf %109, %112 : vector<16x32xf32>
    %114 = vector.extract_strided_slice %13 {offsets = [32, 0], sizes = [16, 32], strides = [1, 1]} : vector<64x32xf32> to vector<16x32xf32>
    %115 = vector.extract_strided_slice %14 {offsets = [3, 0, 0], sizes = [1, 32, 32], strides = [1, 1, 1]} : vector<4x32x32xf32> to vector<1x32x32xf32>
    %116 = vector.shape_cast %115 : vector<1x32x32xf32> to vector<32x32xf32>
    %cst_31 = arith.constant dense<0.000000e+00> : vector<16x32xf32>
    %117 = tpu.matmul %98, %116, %cst_31 {dimension_numbers = #tpu.dot_dimension_numbers<[1], [0], [0], [1], [0, 0, 1, 1], [], []>} : vector<16x32xf32>, vector<32x32xf32>, vector<16x32xf32> -> vector<16x32xf32>
    %118 = arith.addf %114, %117 : vector<16x32xf32>
    %119 = arith.negf %103 : vector<16x32xf32>
    %120 = math.exp %119 : vector<16x32xf32>
    %cst_32 = arith.constant 1.000000e+00 : f32
    %121 = vector.broadcast %cst_32 : f32 to vector<16x32xf32>
    %122 = arith.addf %121, %120 : vector<16x32xf32>
    %123 = arith.divf %121, %122 : vector<16x32xf32>
    %124 = arith.negf %108 : vector<16x32xf32>
    %125 = math.exp %124 : vector<16x32xf32>
    %cst_33 = arith.constant 1.000000e+00 : f32
    %126 = vector.broadcast %cst_33 : f32 to vector<16x32xf32>
    %127 = arith.addf %126, %125 : vector<16x32xf32>
    %128 = arith.divf %126, %127 : vector<16x32xf32>
    %129 = math.tanh %113 : vector<16x32xf32>
    %130 = arith.negf %118 : vector<16x32xf32>
    %131 = math.exp %130 : vector<16x32xf32>
    %cst_34 = arith.constant 1.000000e+00 : f32
    %132 = vector.broadcast %cst_34 : f32 to vector<16x32xf32>
    %133 = arith.addf %132, %131 : vector<16x32xf32>
    %134 = arith.divf %132, %133 : vector<16x32xf32>
    %135 = arith.mulf %128, %96 : vector<16x32xf32>
    %136 = arith.mulf %123, %129 : vector<16x32xf32>
    %137 = arith.addf %135, %136 : vector<16x32xf32>
    %138 = math.tanh %137 : vector<16x32xf32>
    %139 = arith.mulf %134, %138 : vector<16x32xf32>
    %140 = vector.extract_strided_slice %10 {offsets = [48, 0], sizes = [16, 32], strides = [1, 1]} : vector<64x32xf32> to vector<16x32xf32>
    %141 = vector.extract_strided_slice %14 {offsets = [0, 0, 0], sizes = [1, 32, 32], strides = [1, 1, 1]} : vector<4x32x32xf32> to vector<1x32x32xf32>
    %142 = vector.shape_cast %141 : vector<1x32x32xf32> to vector<32x32xf32>
    %cst_35 = arith.constant dense<0.000000e+00> : vector<16x32xf32>
    %143 = tpu.matmul %139, %142, %cst_35 {dimension_numbers = #tpu.dot_dimension_numbers<[1], [0], [0], [1], [0, 0, 1, 1], [], []>} : vector<16x32xf32>, vector<32x32xf32>, vector<16x32xf32> -> vector<16x32xf32>
    %144 = arith.addf %140, %143 : vector<16x32xf32>
    %145 = vector.extract_strided_slice %11 {offsets = [48, 0], sizes = [16, 32], strides = [1, 1]} : vector<64x32xf32> to vector<16x32xf32>
    %146 = vector.extract_strided_slice %14 {offsets = [1, 0, 0], sizes = [1, 32, 32], strides = [1, 1, 1]} : vector<4x32x32xf32> to vector<1x32x32xf32>
    %147 = vector.shape_cast %146 : vector<1x32x32xf32> to vector<32x32xf32>
    %cst_36 = arith.constant dense<0.000000e+00> : vector<16x32xf32>
    %148 = tpu.matmul %139, %147, %cst_36 {dimension_numbers = #tpu.dot_dimension_numbers<[1], [0], [0], [1], [0, 0, 1, 1], [], []>} : vector<16x32xf32>, vector<32x32xf32>, vector<16x32xf32> -> vector<16x32xf32>
    %149 = arith.addf %145, %148 : vector<16x32xf32>
    %150 = vector.extract_strided_slice %12 {offsets = [48, 0], sizes = [16, 32], strides = [1, 1]} : vector<64x32xf32> to vector<16x32xf32>
    %151 = vector.extract_strided_slice %14 {offsets = [2, 0, 0], sizes = [1, 32, 32], strides = [1, 1, 1]} : vector<4x32x32xf32> to vector<1x32x32xf32>
    %152 = vector.shape_cast %151 : vector<1x32x32xf32> to vector<32x32xf32>
    %cst_37 = arith.constant dense<0.000000e+00> : vector<16x32xf32>
    %153 = tpu.matmul %139, %152, %cst_37 {dimension_numbers = #tpu.dot_dimension_numbers<[1], [0], [0], [1], [0, 0, 1, 1], [], []>} : vector<16x32xf32>, vector<32x32xf32>, vector<16x32xf32> -> vector<16x32xf32>
    %154 = arith.addf %150, %153 : vector<16x32xf32>
    %155 = vector.extract_strided_slice %13 {offsets = [48, 0], sizes = [16, 32], strides = [1, 1]} : vector<64x32xf32> to vector<16x32xf32>
    %156 = vector.extract_strided_slice %14 {offsets = [3, 0, 0], sizes = [1, 32, 32], strides = [1, 1, 1]} : vector<4x32x32xf32> to vector<1x32x32xf32>
    %157 = vector.shape_cast %156 : vector<1x32x32xf32> to vector<32x32xf32>
    %cst_38 = arith.constant dense<0.000000e+00> : vector<16x32xf32>
    %158 = tpu.matmul %139, %157, %cst_38 {dimension_numbers = #tpu.dot_dimension_numbers<[1], [0], [0], [1], [0, 0, 1, 1], [], []>} : vector<16x32xf32>, vector<32x32xf32>, vector<16x32xf32> -> vector<16x32xf32>
    %159 = arith.addf %155, %158 : vector<16x32xf32>
    %160 = arith.negf %144 : vector<16x32xf32>
    %161 = math.exp %160 : vector<16x32xf32>
    %cst_39 = arith.constant 1.000000e+00 : f32
    %162 = vector.broadcast %cst_39 : f32 to vector<16x32xf32>
    %163 = arith.addf %162, %161 : vector<16x32xf32>
    %164 = arith.divf %162, %163 : vector<16x32xf32>
    %165 = arith.negf %149 : vector<16x32xf32>
    %166 = math.exp %165 : vector<16x32xf32>
    %cst_40 = arith.constant 1.000000e+00 : f32
    %167 = vector.broadcast %cst_40 : f32 to vector<16x32xf32>
    %168 = arith.addf %167, %166 : vector<16x32xf32>
    %169 = arith.divf %167, %168 : vector<16x32xf32>
    %170 = math.tanh %154 : vector<16x32xf32>
    %171 = arith.negf %159 : vector<16x32xf32>
    %172 = math.exp %171 : vector<16x32xf32>
    %cst_41 = arith.constant 1.000000e+00 : f32
    %173 = vector.broadcast %cst_41 : f32 to vector<16x32xf32>
    %174 = arith.addf %173, %172 : vector<16x32xf32>
    %175 = arith.divf %173, %174 : vector<16x32xf32>
    %176 = arith.mulf %169, %137 : vector<16x32xf32>
    %177 = arith.mulf %164, %170 : vector<16x32xf32>
    %178 = arith.addf %176, %177 : vector<16x32xf32>
    %179 = math.tanh %178 : vector<16x32xf32>
    %180 = arith.mulf %175, %179 : vector<16x32xf32>
    %c0_42 = arith.constant 0 : index
    %c0_43 = arith.constant 0 : index
    %181 = vector.load %arg8[%c0_42, %c0_43] : memref<16x32xf32, #tpu.memory_space<vmem>>, vector<16x32xf32>
    tpu.vector_store %arg8[%c0_42, %c0_43], %180 {strides = array<i32>} : memref<16x32xf32, #tpu.memory_space<vmem>>, vector<16x32xf32>,
    %c0_44 = arith.constant 0 : index
    %c0_45 = arith.constant 0 : index
    %182 = vector.load %arg9[%c0_44, %c0_45] : memref<16x32xf32, #tpu.memory_space<vmem>>, vector<16x32xf32>
    tpu.vector_store %arg9[%c0_44, %c0_45], %178 {strides = array<i32>} : memref<16x32xf32, #tpu.memory_space<vmem>>, vector<16x32xf32>,
    %c1_i32 = arith.constant 1 : i32
    %183 = arith.cmpi eq, %arg0, %c1_i32 : i32
    %184 = arith.extui %183 : i1 to i32
    %c0_i32_46 = arith.constant 0 : i32
    %185 = arith.cmpi ne, %184, %c0_i32_46 : i32
    scf.if %185 {
      %c0_47 = arith.constant 0 : index
      %c0_48 = arith.constant 0 : index
      %186 = vector.load %arg5[%c0_47, %c0_48] : memref<8x8xf32, #tpu.memory_space<vmem>>, vector<8x8xf32>
      %c0_49 = arith.constant 0 : index
      %c0_50 = arith.constant 0 : index
      %187 = vector.load %arg6[%c0_49, %c0_50] : memref<1x8xf32, #tpu.memory_space<vmem>>, vector<1x8xf32>
      %188 = vector.extract_strided_slice %180 {offsets = [0, 0], sizes = [8, 32], strides = [1, 1]} : vector<16x32xf32> to vector<8x32xf32>
      %189 = arith.mulf %188, %188 : vector<8x32xf32>
      %cst_51 = arith.constant dense<0.000000e+00> : vector<8xf32>
      %190 = vector.multi_reduction <add>, %189, %cst_51 [1] : vector<8x32xf32> to vector<8xf32>
      %191 = vector.shape_cast %190 : vector<8xf32> to vector<8x1xf32>
      %192 = math.sqrt %191 : vector<8x1xf32>
      %cst_52 = arith.constant 9.99999993E-9 : f32
      %193 = vector.broadcast %cst_52 : f32 to vector<8x1xf32>
      %194 = arith.maximumf %192, %193 : vector<8x1xf32>
      %195 = vector.broadcast %194 : vector<8x1xf32> to vector<8x32xf32>
      %196 = arith.divf %188, %195 : vector<8x32xf32>
      %cst_53 = arith.constant dense<0.000000e+00> : vector<8x8xf32>
      %197 = tpu.matmul %196, %196, %cst_53 {dimension_numbers = #tpu.dot_dimension_numbers<[1], [1], [0], [0], [0, 0, 1, 0], [], []>} : vector<8x32xf32>, vector<8x32xf32>, vector<8x8xf32> -> vector<8x8xf32>
      %cst_54 = arith.constant dense<0.000000e+00> : vector<8x8xf32>
      %198 = tpu.matmul %197, %186, %cst_54 {dimension_numbers = #tpu.dot_dimension_numbers<[1], [0], [0], [1], [0, 0, 1, 1], [], []>} : vector<8x8xf32>, vector<8x8xf32>, vector<8x8xf32> -> vector<8x8xf32>
      %199 = vector.broadcast %187 : vector<1x8xf32> to vector<8x8xf32>
      %200 = arith.addf %198, %199 : vector<8x8xf32>
      %201 = arith.negf %200 : vector<8x8xf32>
      %202 = math.exp %201 : vector<8x8xf32>
      %cst_55 = arith.constant 1.000000e+00 : f32
      %203 = vector.broadcast %cst_55 : f32 to vector<8x8xf32>
      %204 = arith.addf %203, %202 : vector<8x8xf32>
      %205 = arith.divf %203, %204 : vector<8x8xf32>
      %c0_56 = arith.constant 0 : index
      %c0_57 = arith.constant 0 : index
      %c0_58 = arith.constant 0 : index
      %206 = vector.load %arg7[%c0_56, %c0_57, %c0_58] : memref<2x8x8xf32, #tpu.memory_space<vmem>>, vector<1x8x8xf32>
      %207 = vector.shape_cast %206 : vector<1x8x8xf32> to vector<8x8xf32>
      %208 = vector.shape_cast %205 : vector<8x8xf32> to vector<1x8x8xf32>
      tpu.vector_store %arg7[%c0_56, %c0_57, %c0_58], %208 {strides = array<i32>} : memref<2x8x8xf32, #tpu.memory_space<vmem>>, vector<1x8x8xf32>,
      %209 = vector.extract_strided_slice %180 {offsets = [8, 0], sizes = [8, 32], strides = [1, 1]} : vector<16x32xf32> to vector<8x32xf32>
      %210 = arith.mulf %209, %209 : vector<8x32xf32>
      %cst_59 = arith.constant dense<0.000000e+00> : vector<8xf32>
      %211 = vector.multi_reduction <add>, %210, %cst_59 [1] : vector<8x32xf32> to vector<8xf32>
      %212 = vector.shape_cast %211 : vector<8xf32> to vector<8x1xf32>
      %213 = math.sqrt %212 : vector<8x1xf32>
      %cst_60 = arith.constant 9.99999993E-9 : f32
      %214 = vector.broadcast %cst_60 : f32 to vector<8x1xf32>
      %215 = arith.maximumf %213, %214 : vector<8x1xf32>
      %216 = vector.broadcast %215 : vector<8x1xf32> to vector<8x32xf32>
      %217 = arith.divf %209, %216 : vector<8x32xf32>
      %cst_61 = arith.constant dense<0.000000e+00> : vector<8x8xf32>
      %218 = tpu.matmul %217, %217, %cst_61 {dimension_numbers = #tpu.dot_dimension_numbers<[1], [1], [0], [0], [0, 0, 1, 0], [], []>} : vector<8x32xf32>, vector<8x32xf32>, vector<8x8xf32> -> vector<8x8xf32>
      %cst_62 = arith.constant dense<0.000000e+00> : vector<8x8xf32>
      %219 = tpu.matmul %218, %186, %cst_62 {dimension_numbers = #tpu.dot_dimension_numbers<[1], [0], [0], [1], [0, 0, 1, 1], [], []>} : vector<8x8xf32>, vector<8x8xf32>, vector<8x8xf32> -> vector<8x8xf32>
      %220 = vector.broadcast %187 : vector<1x8xf32> to vector<8x8xf32>
      %221 = arith.addf %219, %220 : vector<8x8xf32>
      %222 = arith.negf %221 : vector<8x8xf32>
      %223 = math.exp %222 : vector<8x8xf32>
      %cst_63 = arith.constant 1.000000e+00 : f32
      %224 = vector.broadcast %cst_63 : f32 to vector<8x8xf32>
      %225 = arith.addf %224, %223 : vector<8x8xf32>
      %226 = arith.divf %224, %225 : vector<8x8xf32>
      %c1 = arith.constant 1 : index
      %c0_64 = arith.constant 0 : index
      %c0_65 = arith.constant 0 : index
      %227 = vector.load %arg7[%c1, %c0_64, %c0_65] : memref<2x8x8xf32, #tpu.memory_space<vmem>>, vector<1x8x8xf32>
      %228 = vector.shape_cast %227 : vector<1x8x8xf32> to vector<8x8xf32>
      %229 = vector.shape_cast %226 : vector<8x8xf32> to vector<1x8x8xf32>
      tpu.vector_store %arg7[%c1, %c0_64, %c0_65], %229 {strides = array<i32>} : memref<2x8x8xf32, #tpu.memory_space<vmem>>, vector<1x8x8xf32>,
    } else {
    }
    return
  }
  func.func @transform_0(%arg0: i32) -> (i32, i32, i32) {
    %c0_i32 = arith.constant 0 : i32
    %c0_i32_0 = arith.constant 0 : i32
    %c0_i32_1 = arith.constant 0 : i32
    return %arg0, %c0_i32, %c0_i32_0 : i32, i32, i32
  }
  func.func @transform_1(%arg0: i32) -> (i32, i32) {
    %c0_i32 = arith.constant 0 : i32
    %c0_i32_0 = arith.constant 0 : i32
    %c0_i32_1 = arith.constant 0 : i32
    return %c0_i32, %c0_i32_0 : i32, i32
  }
  func.func @transform_2(%arg0: i32) -> (i32, i32, i32) {
    %c0_i32 = arith.constant 0 : i32
    %c0_i32_0 = arith.constant 0 : i32
    %c0_i32_1 = arith.constant 0 : i32
    %c0_i32_2 = arith.constant 0 : i32
    return %c0_i32, %c0_i32_0, %c0_i32_1 : i32, i32, i32
  }
  func.func @transform_3(%arg0: i32) -> (i32, i32) {
    %c0_i32 = arith.constant 0 : i32
    %c0_i32_0 = arith.constant 0 : i32
    %c0_i32_1 = arith.constant 0 : i32
    return %c0_i32, %c0_i32_0 : i32, i32
  }
  func.func @transform_4(%arg0: i32) -> (i32, i32) {
    %c0_i32 = arith.constant 0 : i32
    %c0_i32_0 = arith.constant 0 : i32
    %c0_i32_1 = arith.constant 0 : i32
    return %c0_i32, %c0_i32_0 : i32, i32
  }
  func.func @transform_5(%arg0: i32) -> (i32, i32) {
    %c0_i32 = arith.constant 0 : i32
    %c0_i32_0 = arith.constant 0 : i32
    %c0_i32_1 = arith.constant 0 : i32
    return %c0_i32, %c0_i32_0 : i32, i32
  }
  func.func @transform_6(%arg0: i32) -> (i32, i32, i32) {
    %c0_i32 = arith.constant 0 : i32
    %c0_i32_0 = arith.constant 0 : i32
    %c0_i32_1 = arith.constant 0 : i32
    %c0_i32_2 = arith.constant 0 : i32
    return %c0_i32, %c0_i32_0, %c0_i32_1 : i32, i32, i32
  }
}

</mosaic_0001>

<llo_original>
// kernel: tpu_custom_call.1
$region0: #{tpu_custom_call.1}
  #allocation0 [shape = 'u32[]', space=smem, size = 0x4, offset = 0x4, fixed_abs, tag = 'smem constant byte address 0x4 - core index']
  #allocation1 [shape = 'u32[72,128]{1,0:T(1,128)}', space=vmem, size = 0x9000, scoped, tag = 'internal scratch']
  #allocation2 [shape = 'f32[16,32]{1,0:T(8,128)}', space=vmem, size = 0x2000, scoped, tag = 'scratch operand']
  #allocation3 [shape = 'f32[16,32]{1,0:T(8,128)}', space=vmem, size = 0x2000, scoped, tag = 'scratch operand']
  %s0 = inlined_call_operand.hbm [shape: f32[8,16,16], index: 0, kind: input, shape index: {}]
  %s1 = inlined_call_operand.hbm [shape: f32[16,128], index: 1, kind: input, shape index: {}]
  %s2 = inlined_call_operand.hbm [shape: f32[4,32,32], index: 2, kind: input, shape index: {}]
  %s3 = inlined_call_operand.vmem [shape: f32[1,128], index: 3, kind: input, shape index: {}]
  %s4 = inlined_call_operand.hbm [shape: f32[8,8], index: 4, kind: input, shape index: {}]
  %s5 = inlined_call_operand.vmem [shape: f32[1,8], index: 5, kind: input, shape index: {}]
  %s6 = inlined_call_operand.hbm [shape: f32[2,8,8], index: 6, kind: output, shape index: {}]
  %s7 = sld [smem:[#allocation0]]
  $region81: #{tpu_custom_call.1} parent=0
    _
  %s9 = ssub.s32 1, %s7
  %s10 = scalar_select 0, %s9, %s7
  $region1: #{tpu_custom_call.1} parent=0
    #allocation4 [shape = 'u8[65536]{0}', space=vmem, size = 0x10000, scoped, tag = 'input window, operand 0']
    #allocation5 [shape = 's32[2]{0}', space=sflag, size = 0x8, scoped, tag = 'scoped memory for tpu_custom_call.1']
    #allocation6 [shape = 's32[2]{0}', space=sflag, size = 0x8, scoped, tag = 'scoped memory for tpu_custom_call.1']
    #allocation7 [shape = 'u8[8192]{0}', space=vmem, size = 0x2000, scoped, tag = 'input window, operand 1, single buffered']
    #allocation8 [shape = 's32[1]{0}', space=sflag, size = 0x4, scoped, tag = 'scoped memory for tpu_custom_call.1']
    #allocation9 [shape = 'u8[65536]{0}', space=vmem, size = 0x10000, scoped, tag = 'input window, operand 2, single buffered']
    #allocation10 [shape = 'u8[4096]{0}', space=vmem, size = 0x1000, scoped, tag = 'input window, operand 4, single buffered']
    #allocation11 [shape = 's32[1]{0}', space=sflag, size = 0x4, scoped, tag = 'scoped memory for tpu_custom_call.1']
    #allocation12 [shape = 'u8[8192]{0}', space=vmem, size = 0x2000, scoped, tag = 'output window, operand 0, single buffered']
    %11 = vsyncpa [#allocation5], 0
    %s12 = scalar_lea.sflag [#allocation5], 1
    %13 = vsyncpa %s12, 0
    %14 = vsyncpa [#allocation8], 0
    %15 = vsyncpa [#allocation11], 0
    %16 = vsyncpa [#allocation6], 0
    loop: start=0, step=1, limit=4
    $region2: #{tpu_custom_call.1} parent=1 // loop_pre_header
      _
    $region3: #{tpu_custom_call.1} parent=1 // loop_header
      %s18 = sphi 0, %s22
      %p19 = scmp.ge.s32.totalorder %s18, 4
      %s28 = sphi 0, %s30
      %s31 = sphi 0, %s28
      %s32 = sphi 0, %s31
      %s48 = sphi 0, %s32
      %s52 = sphi 0, %s52
      %s54 = sphi 0, %s52
      %s55 = sphi 0, %s54
      %s69 = sphi 0, %s55
      %s73 = sphi 0, %s73
      %s75 = sphi 0, %s73
      %s76 = sphi 0, %s75
      %s90 = sphi 0, %s76
      %s94 = sphi 0, %s94
      %s96 = sphi 0, %s94
      %s97 = sphi 0, %s96
      %s111 = sphi 0, %s97
      %s115 = sphi 0, %s115
      %s117 = sphi 0, %s115
      %s118 = sphi 0, %s117
      %s132 = sphi 0, %s118
      %s136 = sphi 0, %s136
      %s138 = sphi 0, %s136
      %s139 = sphi 0, %s138
      %s153 = sphi 0, %s139
      %s157 = sphi 0, %s157
      %s159 = sphi 0, %s157
      %s160 = sphi 0, %s159
      %s174 = sphi 0, %s160
    $region4: #{tpu_custom_call.1} parent=1 // loop_header_branch
      %21 = sbr.rel (%p19) target = $region8
    $region5: #{tpu_custom_call.1} parent=1 // loop_body
      %s23 = ssub.s32 %s18, 1
      %s24 = ssub.s32 %s18, 2
      %s25 = sadd.s32 %s18, 1
      %s26 = ssub.s32 %s18, %s25
      %p27 = scmp.eq.s32.totalorder %s26, 0
      %s29 = sadd.s32 %s28, 1
      %s30 = scalar_select %p27, %s28, %s29
      %p33 = pneg %p27
      %p34 = scmp.eq.s32.totalorder %s18, 1
      %p35 = por %p33, %p34
      %p36 = scmp.ne.s32.totalorder %s28, %s31
      %p37 = scmp.eq.s32.totalorder %s18, 0
      %p38 = por %p36, %p37
      %p39 = scmp.ne.s32.totalorder %s28, %s31
      %p40 = scmp.eq.s32.totalorder %s23, 1
      %p41 = por %p39, %p40
      %p42 = scmp.ne.s32.totalorder %s31, %s32
      %p43 = scmp.eq.s32.totalorder %s23, 0
      %p44 = por %p42, %p43
      %p45 = scmp.ne.s32.totalorder %s31, %s32
      %p46 = scmp.eq.s32.totalorder %s24, 1
      %p47 = por %p45, %p46
      %p49 = scmp.ne.s32.totalorder %s32, %s48
      %p50 = scmp.eq.s32.totalorder %s24, 0
      %p51 = por %p49, %p50
      %s53 = sadd.s32 %s52, 1
      %p56 = scmp.eq.s32.totalorder %s18, 1
      %p57 = scmp.ne.s32.totalorder %s52, %s54
      %p58 = scmp.eq.s32.totalorder %s18, 0
      %p59 = por %p57, %p58
      %p60 = scmp.ne.s32.totalorder %s52, %s54
      %p61 = scmp.eq.s32.totalorder %s23, 1
      %p62 = por %p60, %p61
      %p63 = scmp.ne.s32.totalorder %s54, %s55
      %p64 = scmp.eq.s32.totalorder %s23, 0
      %p65 = por %p63, %p64
      %p66 = scmp.ne.s32.totalorder %s54, %s55
      %p67 = scmp.eq.s32.totalorder %s24, 1
      %p68 = por %p66, %p67
      %p70 = scmp.ne.s32.totalorder %s55, %s69
      %p71 = scmp.eq.s32.totalorder %s24, 0
      %p72 = por %p70, %p71
      %s74 = sadd.s32 %s73, 1
      %p77 = scmp.eq.s32.totalorder %s18, 1
      %p78 = scmp.ne.s32.totalorder %s73, %s75
      %p79 = scmp.eq.s32.totalorder %s18, 0
      %p80 = por %p78, %p79
      %p81 = scmp.ne.s32.totalorder %s73, %s75
      %p82 = scmp.eq.s32.totalorder %s23, 1
      %p83 = por %p81, %p82
      %p84 = scmp.ne.s32.totalorder %s75, %s76
      %p85 = scmp.eq.s32.totalorder %s23, 0
      %p86 = por %p84, %p85
      %p87 = scmp.ne.s32.totalorder %s75, %s76
      %p88 = scmp.eq.s32.totalorder %s24, 1
      %p89 = por %p87, %p88
      %p91 = scmp.ne.s32.totalorder %s76, %s90
      %p92 = scmp.eq.s32.totalorder %s24, 0
      %p93 = por %p91, %p92
      %s95 = sadd.s32 %s94, 1
      %p98 = scmp.eq.s32.totalorder %s18, 1
      %p99 = scmp.ne.s32.totalorder %s94, %s96
      %p100 = scmp.eq.s32.totalorder %s18, 0
      %p101 = por %p99, %p100
      %p102 = scmp.ne.s32.totalorder %s94, %s96
      %p103 = scmp.eq.s32.totalorder %s23, 1
      %p104 = por %p102, %p103
      %p105 = scmp.ne.s32.totalorder %s96, %s97
      %p106 = scmp.eq.s32.totalorder %s23, 0
      %p107 = por %p105, %p106
      %p108 = scmp.ne.s32.totalorder %s96, %s97
      %p109 = scmp.eq.s32.totalorder %s24, 1
      %p110 = por %p108, %p109
      %p112 = scmp.ne.s32.totalorder %s97, %s111
      %p113 = scmp.eq.s32.totalorder %s24, 0
      %p114 = por %p112, %p113
      %s116 = sadd.s32 %s115, 1
      %p119 = scmp.eq.s32.totalorder %s18, 1
      %p120 = scmp.ne.s32.totalorder %s115, %s117
      %p121 = scmp.eq.s32.totalorder %s18, 0
      %p122 = por %p120, %p121
      %p123 = scmp.ne.s32.totalorder %s115, %s117
      %p124 = scmp.eq.s32.totalorder %s23, 1
      %p125 = por %p123, %p124
      %p126 = scmp.ne.s32.totalorder %s117, %s118
      %p127 = scmp.eq.s32.totalorder %s23, 0
      %p128 = por %p126, %p127
      %p129 = scmp.ne.s32.totalorder %s117, %s118
      %p130 = scmp.eq.s32.totalorder %s24, 1
      %p131 = por %p129, %p130
      %p133 = scmp.ne.s32.totalorder %s118, %s132
      %p134 = scmp.eq.s32.totalorder %s24, 0
      %p135 = por %p133, %p134
      %s137 = sadd.s32 %s136, 1
      %p140 = scmp.eq.s32.totalorder %s18, 1
      %p141 = scmp.ne.s32.totalorder %s136, %s138
      %p142 = scmp.eq.s32.totalorder %s18, 0
      %p143 = por %p141, %p142
      %p144 = scmp.ne.s32.totalorder %s136, %s138
      %p145 = scmp.eq.s32.totalorder %s23, 1
      %p146 = por %p144, %p145
      %p147 = scmp.ne.s32.totalorder %s138, %s139
      %p148 = scmp.eq.s32.totalorder %s23, 0
      %p149 = por %p147, %p148
      %p150 = scmp.ne.s32.totalorder %s138, %s139
      %p151 = scmp.eq.s32.totalorder %s24, 1
      %p152 = por %p150, %p151
      %p154 = scmp.ne.s32.totalorder %s139, %s153
      %p155 = scmp.eq.s32.totalorder %s24, 0
      %p156 = por %p154, %p155
      %s158 = sadd.s32 %s157, 1
      %p161 = scmp.eq.s32.totalorder %s18, 1
      %p162 = scmp.ne.s32.totalorder %s157, %s159
      %p163 = scmp.eq.s32.totalorder %s18, 0
      %p164 = por %p162, %p163
      %p165 = scmp.ne.s32.totalorder %s157, %s159
      %p166 = scmp.eq.s32.totalorder %s23, 1
      %p167 = por %p165, %p166
      %p168 = scmp.ne.s32.totalorder %s159, %s160
      %p169 = scmp.eq.s32.totalorder %s23, 0
      %p170 = por %p168, %p169
      %p171 = scmp.ne.s32.totalorder %s159, %s160
      %p172 = scmp.eq.s32.totalorder %s24, 1
      %p173 = por %p171, %p172
      %p175 = scmp.ne.s32.totalorder %s160, %s174
      %p176 = scmp.eq.s32.totalorder %s24, 0
      %p177 = por %p175, %p176
      %p178 = scmp.le.s32.totalorder 1, %s18
      %p179 = scmp.lt.s32.totalorder %s18, 3
      %p180 = pnand %p178, %p179
      %p181 = pneg %p180
      // Predicated region
      $region9: #{tpu_custom_call.1} parent=5 // pred_check
        _
      $region10: #{tpu_custom_call.1} parent=5 // pred_check_branch
        %183 = sbr.rel (%p180) target = $region12
      $region11: #{tpu_custom_call.1} parent=5 // pred_region
        %s184 = ssub.s32 %s18, 1
        // Predicated region
        $region13: #{tpu_custom_call.1} parent=11 // pred_check
          %p185 = pneg %p65
        $region14: #{tpu_custom_call.1} parent=11 // pred_check_branch
          %187 = sbr.rel (%p185) target = $region16
        $region15: #{tpu_custom_call.1} parent=11 // pred_region
          %189 = vsyncadd [#allocation8], 0
          %s190 = sshll.u32 %s1, 4
          %s191 = int_to_ptr.hbm [resolvable:$true] %s190
          %s192 = sshll.u32 [#allocation7], 4
          %s193 = int_to_ptr.vmem [resolvable:$true] %s192
          %198 = dma.hbm_to_vmem [thread:$0]  %s191, 256, %s193, [#allocation8], 128, 128, 8
        $region16: #{tpu_custom_call.1} parent=11 // pred_fallthru
          _
        // Predicated region
        $region17: #{tpu_custom_call.1} parent=11 // pred_check
          %p199 = pneg %p86
        $region18: #{tpu_custom_call.1} parent=11 // pred_check_branch
          %201 = sbr.rel (%p199) target = $region20
        $region19: #{tpu_custom_call.1} parent=11 // pred_region
          %203 = vsyncadd [#allocation8], 0
          %s204 = sshll.u32 %s2, 4
          %s205 = int_to_ptr.hbm [resolvable:$true] %s204
          %s206 = sshll.u32 [#allocation9], 4
          %s207 = int_to_ptr.vmem [resolvable:$true] %s206
          %212 = dma.hbm_to_vmem [thread:$0]  %s205, 2048, %s207, [#allocation8], 128, 128, 8
        $region20: #{tpu_custom_call.1} parent=11 // pred_fallthru
          _
        // Predicated region
        $region21: #{tpu_custom_call.1} parent=11 // pred_check
          %p213 = pneg %p107
        $region22: #{tpu_custom_call.1} parent=11 // pred_check_branch
          %215 = sbr.rel (%p213) target = $region24
        $region23: #{tpu_custom_call.1} parent=11 // pred_region
          _
        $region24: #{tpu_custom_call.1} parent=11 // pred_fallthru
          _
        // Predicated region
        $region25: #{tpu_custom_call.1} parent=11 // pred_check
          %p216 = pneg %p128
        $region26: #{tpu_custom_call.1} parent=11 // pred_check_branch
          %218 = sbr.rel (%p216) target = $region28
        $region27: #{tpu_custom_call.1} parent=11 // pred_region
          %220 = vsyncadd [#allocation11], 0
          %s222 = sshll.u32 %s4, 4
          %s223 = int_to_ptr.hbm [resolvable:$true] %s222
          %s224 = sshll.u32 [#allocation10], 4
          %s225 = int_to_ptr.vmem [resolvable:$true] %s224
          %227 = dma.hbm_to_vmem [thread:$0]  %s223, 128, %s225, [#allocation11]
        $region28: #{tpu_custom_call.1} parent=11 // pred_fallthru
          _
        // Predicated region
        $region29: #{tpu_custom_call.1} parent=11 // pred_check
          %p228 = pneg %p149
        $region30: #{tpu_custom_call.1} parent=11 // pred_check_branch
          %230 = sbr.rel (%p228) target = $region32
        $region31: #{tpu_custom_call.1} parent=11 // pred_region
          _
        $region32: #{tpu_custom_call.1} parent=11 // pred_fallthru
          _
      $region12: #{tpu_custom_call.1} parent=5 // pred_fallthru
        _
      %p231 = scmp.lt.s32.totalorder %s18, 2
      // Predicated region
      $region33: #{tpu_custom_call.1} parent=5 // pred_check
        %p232 = pneg %p231
      $region34: #{tpu_custom_call.1} parent=5 // pred_check_branch
        %234 = sbr.rel (%p232) target = $region36
      $region35: #{tpu_custom_call.1} parent=5 // pred_region
        // Predicated region
        $region37: #{tpu_custom_call.1} parent=35 // pred_check
          %p235 = pneg %p38
        $region38: #{tpu_custom_call.1} parent=35 // pred_check_branch
          %237 = sbr.rel (%p235) target = $region40
        $region39: #{tpu_custom_call.1} parent=35 // pred_region
          %s238 = sand.u32 %s28, 1
          %s239 = scalar_lea.sflag [#allocation5], %s238
          %s240 = sand.u32 %s28, 1
          %s241 = smul.addr %s240, 64
          %s242 = scalar_lea.vmem [#allocation4], %s241
          %s243 = smul.u32 4, %s18
          %245 = vsyncadd %s239, 0
          %s246 = smul.addr %s243, 2
          %s247 = smul.addr %s246, 8
          %s248 = scalar_lea.hbm %s0, %s247
          %s249 = sshll.u32 %s248, 4
          %s250 = int_to_ptr.hbm [resolvable:$true] %s249
          %s251 = sshll.u32 %s242, 4
          %s252 = int_to_ptr.vmem [resolvable:$true] %s251
          %257 = dma.hbm_to_vmem [thread:$0]  %s250, 1024, %s252, %s239, 128, 128, 8
        $region40: #{tpu_custom_call.1} parent=35 // pred_fallthru
          _
      $region36: #{tpu_custom_call.1} parent=5 // pred_fallthru
        _
      %p258 = scmp.le.s32.totalorder 1, %s18
      %p259 = scmp.lt.s32.totalorder %s18, 3
      %p260 = pnand %p258, %p259
      %p261 = pneg %p260
      // Predicated region
      $region41: #{tpu_custom_call.1} parent=5 // pred_check
        _
      $region42: #{tpu_custom_call.1} parent=5 // pred_check_branch
        %263 = sbr.rel (%p260) target = $region44
      $region43: #{tpu_custom_call.1} parent=5 // pred_region
        %s264 = ssub.s32 %s18, 1
        %s265 = sand.u32 %s31, 1
        %s266 = scalar_lea.sflag [#allocation5], %s265
        %s267 = sand.u32 %s31, 1
        %s268 = smul.addr %s267, 64
        %s269 = scalar_lea.vmem [#allocation4], %s268
        // Predicated region
        $region45: #{tpu_custom_call.1} parent=43 // pred_check
          %p270 = pneg %p44
        $region46: #{tpu_custom_call.1} parent=43 // pred_check_branch
          %272 = sbr.rel (%p270) target = $region48
        $region47: #{tpu_custom_call.1} parent=43 // pred_region
          %274 = dma.done %s266, 1024
        $region48: #{tpu_custom_call.1} parent=43 // pred_fallthru
          _
        // Predicated region
        $region49: #{tpu_custom_call.1} parent=43 // pred_check
          %p275 = pneg %p65
        $region50: #{tpu_custom_call.1} parent=43 // pred_check_branch
          %277 = sbr.rel (%p275) target = $region52
        $region51: #{tpu_custom_call.1} parent=43 // pred_region
          %279 = dma.done [#allocation8], 256
        $region52: #{tpu_custom_call.1} parent=43 // pred_fallthru
          _
        // Predicated region
        $region53: #{tpu_custom_call.1} parent=43 // pred_check
          %p280 = pneg %p86
        $region54: #{tpu_custom_call.1} parent=43 // pred_check_branch
          %282 = sbr.rel (%p280) target = $region56
        $region55: #{tpu_custom_call.1} parent=43 // pred_region
          %284 = dma.done [#allocation8], 2048
        $region56: #{tpu_custom_call.1} parent=43 // pred_fallthru
          _
        // Predicated region
        $region57: #{tpu_custom_call.1} parent=43 // pred_check
          %p285 = pneg %p128
        $region58: #{tpu_custom_call.1} parent=43 // pred_check_branch
          %287 = sbr.rel (%p285) target = $region60
        $region59: #{tpu_custom_call.1} parent=43 // pred_region
          %289 = dma.done [#allocation11], 128
        $region60: #{tpu_custom_call.1} parent=43 // pred_fallthru
          _
        %s290 = sand.u32 %s31, 1
        %s291 = scalar_lea.sflag [#allocation5], %s290
        %s292 = sand.u32 %s31, 1
        %s293 = smul.addr %s292, 64
        %s294 = scalar_lea.vmem [#allocation4], %s293
        %p295 = pneg %p44
        %p296 = pneg %p41
        %p297 = pneg %p65
        %p298 = pneg %p62
        %p299 = pneg %p86
        %p300 = pneg %p83
        %p301 = pneg %p107
        %p302 = pneg %p104
        %p303 = pneg %p128
        %p304 = pneg %p125
        %p305 = pneg %p149
        %p306 = pneg %p146
        %p307 = pneg %p170
        %p308 = pneg %p167
        %s309 = smul.u32 4, %s23
        %p310 = scmp.eq.s32.totalorder %s23, 0
        // Predicated region
        $region61: #{tpu_custom_call.1} parent=43 // pred_check
          %p311 = pneg %p310
        $region62: #{tpu_custom_call.1} parent=43 // pred_check_branch
          %313 = sbr.rel (%p311) target = $region64
        $region63: #{tpu_custom_call.1} parent=43 // pred_region
          %vm314 = vcmask 261120
          %315 = vst.msk [vmem:[#allocation2] sm:$0xff] %vm314, 0.0
          %316 = vst.msk [vmem:[#allocation2 + $0x8] sm:$0xff] %vm314, 0.0
          %317 = vst.msk [vmem:[#allocation3] sm:$0xff] %vm314, 0.0
          %318 = vst.msk [vmem:[#allocation3 + $0x8] sm:$0xff] %vm314, 0.0
        $region64: #{tpu_custom_call.1} parent=43 // pred_fallthru
          _
        %v319 = vld [vmem:[%s269] sm:$0xff]
        %v320 = vld [vmem:[%s269 + $0x8] sm:$0xff]
        %v321 = vld [vmem:[%s269 + $0x10] sm:$0xff]
        %v322 = vld [vmem:[%s269 + $0x18] sm:$0xff]
        %v323 = vld [vmem:[%s269 + $0x20] sm:$0xff]
        %v324 = vld [vmem:[%s269 + $0x28] sm:$0xff]
        %v325 = vld [vmem:[%s269 + $0x30] sm:$0xff]
        %v326 = vld [vmem:[%s269 + $0x38] sm:$0xff]
        %v327 = vld [vmem:[#allocation7] sm:$0xff]
        %v328 = vld [vmem:[#allocation7 + $0x8] sm:$0xff]
        %v329 = vld [vmem:[%s3] sm:$0x1]
        %v331 = vperm.slane %v329, 0
        %vm333 = vcmask 130048
        %v335 = vsel %vm333, %v319, 0
        %v338 = vsel %vm333, %v320, 0
        %v341 = vsel %vm333, %v321, 0
        %v344 = vsel %vm333, %v322, 0
        %v347 = vsel %vm333, %v323, 0
        %v350 = vsel %vm333, %v324, 0
        %v353 = vsel %vm333, %v325, 0
        %v356 = vsel %vm333, %v326, 0
        %358 = vmatpush.msra.mxu0 0.0
        %359 = vmatpush.msra.mxu0 0.0
        %360 = vmatpush.msra.mxu0 0.0
        %361 = vmatpush.msra.mxu0 0.0
        %362 = vmatpush.msra.mxu0 0.0
        %363 = vmatpush.msra.mxu0 0.0
        %364 = vmatpush.msra.mxu0 0.0
        %365 = vmatpush.msra.mxu0 0.0
        %366 = vmatpush.msra.mxu0 0.0
        %367 = vmatpush.msra.mxu0 0.0
        %368 = vmatpush.msra.mxu0 0.0
        %369 = vmatpush.msra.mxu0 0.0
        %370 = vmatpush.msra.mxu0 0.0
        %371 = vmatpush.msra.mxu0 0.0
        %372 = vmatpush.msra.mxu0 %v328
        %373 = vmatpush.msra.mxu0 %v327
        %374 = vmatmul.f32.gmra.mxu0 %v335
        %v375 = vpop.f32.mrf.mxu0
        %v376 = vadd.f32 %v331, %v375
        %377 = vmatmul.f32.gmra.mxu0 %v338
        %v378 = vpop.f32.mrf.mxu0
        %v379 = vadd.f32 %v331, %v378
        %380 = vmatmul.f32.gmra.mxu0 %v341
        %v381 = vpop.f32.mrf.mxu0
        %v382 = vadd.f32 %v331, %v381
        %383 = vmatmul.f32.gmra.mxu0 %v344
        %v384 = vpop.f32.mrf.mxu0
        %v385 = vadd.f32 %v331, %v384
        %386 = vmatmul.f32.gmra.mxu0 %v347
        %v387 = vpop.f32.mrf.mxu0
        %v388 = vadd.f32 %v331, %v387
        %389 = vmatmul.f32.gmra.mxu0 %v350
        %v390 = vpop.f32.mrf.mxu0
        %v391 = vadd.f32 %v331, %v390
        %392 = vmatmul.f32.gmra.mxu0 %v353
        %v393 = vpop.f32.mrf.mxu0
        %v394 = vadd.f32 %v331, %v393
        %395 = vmatmul.f32.gmra.mxu0 %v356
        %v396 = vpop.f32.mrf.mxu0
        %v397 = vadd.f32 %v331, %v396
        %398 = vdwg.mxu0
        %v399 = vld [vmem:[#allocation9] sm:$0xff]
        %v400 = vld [vmem:[#allocation9 + $0x8] sm:$0xff]
        %v401 = vld [vmem:[#allocation9 + $0x10] sm:$0xff]
        %v402 = vld [vmem:[#allocation9 + $0x18] sm:$0xff]
        %v403 = vld [vmem:[#allocation9 + $0x20] sm:$0xff]
        %v404 = vld [vmem:[#allocation9 + $0x28] sm:$0xff]
        %v405 = vld [vmem:[#allocation9 + $0x30] sm:$0xff]
        %v406 = vld [vmem:[#allocation9 + $0x38] sm:$0xff]
        %v407 = vld [vmem:[#allocation9 + $0x40] sm:$0xff]
        %v408 = vld [vmem:[#allocation9 + $0x48] sm:$0xff]
        %v409 = vld [vmem:[#allocation9 + $0x50] sm:$0xff]
        %v410 = vld [vmem:[#allocation9 + $0x58] sm:$0xff]
        %v411 = vld [vmem:[#allocation9 + $0x60] sm:$0xff]
        %v412 = vld [vmem:[#allocation9 + $0x68] sm:$0xff]
        %v413 = vld [vmem:[#allocation9 + $0x70] sm:$0xff]
        %v414 = vld [vmem:[#allocation9 + $0x78] sm:$0xff]
        %v415 = vld [vmem:[#allocation2] sm:$0xff]
        %v416 = vld [vmem:[#allocation2 + $0x8] sm:$0xff]
        %v417 = vld [vmem:[#allocation3] sm:$0xff]
        %v418 = vld [vmem:[#allocation3 + $0x8] sm:$0xff]
        %vm419 = vcmask 261120
        %v421 = vsel %vm419, %v415, 0
        %v424 = vsel %vm419, %v416, 0
        %426 = vmatpush.msra.mxu0 0.0
        %427 = vmatpush.msra.mxu0 0.0
        %428 = vmatpush.msra.mxu0 0.0
        %429 = vmatpush.msra.mxu0 0.0
        %430 = vmatpush.msra.mxu0 0.0
        %431 = vmatpush.msra.mxu0 0.0
        %432 = vmatpush.msra.mxu0 0.0
        %433 = vmatpush.msra.mxu0 0.0
        %434 = vmatpush.msra.mxu0 0.0
        %435 = vmatpush.msra.mxu0 0.0
        %436 = vmatpush.msra.mxu0 0.0
        %437 = vmatpush.msra.mxu0 0.0
        %438 = vmatpush.msra.mxu0 %v402
        %439 = vmatpush.msra.mxu0 %v401
        %440 = vmatpush.msra.mxu0 %v400
        %441 = vmatpush.msra.mxu0 %v399
        %442 = vmatmul.f32.gmra.mxu0 %v421
        %v443 = vpop.f32.mrf.mxu0
        %v444 = vadd.f32 0.0, %v443
        %445 = vmatmul.f32.gmra.mxu0 %v424
        %v446 = vpop.f32.mrf.mxu0
        %v447 = vadd.f32 0.0, %v446
        %448 = vdwg.mxu0
        %v449 = vadd.f32 %v376, %v444
        %v450 = vadd.f32 %v379, %v447
        %451 = vmatpush.msra.mxu0 0.0
        %452 = vmatpush.msra.mxu0 0.0
        %453 = vmatpush.msra.mxu0 0.0
        %454 = vmatpush.msra.mxu0 0.0
        %455 = vmatpush.msra.mxu0 0.0
        %456 = vmatpush.msra.mxu0 0.0
        %457 = vmatpush.msra.mxu0 0.0
        %458 = vmatpush.msra.mxu0 0.0
        %459 = vmatpush.msra.mxu0 0.0
        %460 = vmatpush.msra.mxu0 0.0
        %461 = vmatpush.msra.mxu0 0.0
        %462 = vmatpush.msra.mxu0 0.0
        %463 = vmatpush.msra.mxu0 %v406
        %464 = vmatpush.msra.mxu0 %v405
        %465 = vmatpush.msra.mxu0 %v404
        %466 = vmatpush.msra.mxu0 %v403
        %467 = vmatmul.f32.gmra.mxu0 %v421
        %v468 = vpop.f32.mrf.mxu0
        %v469 = vadd.f32 0.0, %v468
        %470 = vmatmul.f32.gmra.mxu0 %v424
        %v471 = vpop.f32.mrf.mxu0
        %v472 = vadd.f32 0.0, %v471
        %473 = vdwg.mxu0
        %476 = vrot.lane.b32.xlu0 %v469, 32
        %v477 = vpop.permute.xlu0 %476
        %478 = vrot.lane.b32.xlu0 %v472, 32
        %v479 = vpop.permute.xlu0 %478
        %v482 = vadd.f32 %v376, %v477
        %v483 = vadd.f32 %v379, %v479
        %484 = vmatpush.msra.mxu0 0.0
        %485 = vmatpush.msra.mxu0 0.0
        %486 = vmatpush.msra.mxu0 0.0
        %487 = vmatpush.msra.mxu0 0.0
        %488 = vmatpush.msra.mxu0 0.0
        %489 = vmatpush.msra.mxu0 0.0
        %490 = vmatpush.msra.mxu0 0.0
        %491 = vmatpush.msra.mxu0 0.0
        %492 = vmatpush.msra.mxu0 0.0
        %493 = vmatpush.msra.mxu0 0.0
        %494 = vmatpush.msra.mxu0 0.0
        %495 = vmatpush.msra.mxu0 0.0
        %496 = vmatpush.msra.mxu0 %v410
        %497 = vmatpush.msra.mxu0 %v409
        %498 = vmatpush.msra.mxu0 %v408
        %499 = vmatpush.msra.mxu0 %v407
        %500 = vmatmul.f32.gmra.mxu0 %v421
        %v501 = vpop.f32.mrf.mxu0
        %v502 = vadd.f32 0.0, %v501
        %503 = vmatmul.f32.gmra.mxu0 %v424
        %v504 = vpop.f32.mrf.mxu0
        %v505 = vadd.f32 0.0, %v504
        %506 = vdwg.mxu0
        %509 = vrot.lane.b32.xlu0 %v502, 64
        %v510 = vpop.permute.xlu0 %509
        %511 = vrot.lane.b32.xlu0 %v505, 64
        %v512 = vpop.permute.xlu0 %511
        %v515 = vadd.f32 %v376, %v510
        %v516 = vadd.f32 %v379, %v512
        %517 = vmatpush.msra.mxu0 0.0
        %518 = vmatpush.msra.mxu0 0.0
        %519 = vmatpush.msra.mxu0 0.0
        %520 = vmatpush.msra.mxu0 0.0
        %521 = vmatpush.msra.mxu0 0.0
        %522 = vmatpush.msra.mxu0 0.0
        %523 = vmatpush.msra.mxu0 0.0
        %524 = vmatpush.msra.mxu0 0.0
        %525 = vmatpush.msra.mxu0 0.0
        %526 = vmatpush.msra.mxu0 0.0
        %527 = vmatpush.msra.mxu0 0.0
        %528 = vmatpush.msra.mxu0 0.0
        %529 = vmatpush.msra.mxu0 %v414
        %530 = vmatpush.msra.mxu0 %v413
        %531 = vmatpush.msra.mxu0 %v412
        %532 = vmatpush.msra.mxu0 %v411
        %533 = vmatmul.f32.gmra.mxu0 %v421
        %v534 = vpop.f32.mrf.mxu0
        %v535 = vadd.f32 0.0, %v534
        %536 = vmatmul.f32.gmra.mxu0 %v424
        %v537 = vpop.f32.mrf.mxu0
        %v538 = vadd.f32 0.0, %v537
        %539 = vdwg.mxu0
        %542 = vrot.lane.b32.xlu0 %v535, 96
        %v543 = vpop.permute.xlu0 %542
        %544 = vrot.lane.b32.xlu0 %v538, 96
        %v545 = vpop.permute.xlu0 %544
        %v548 = vadd.f32 %v376, %v543
        %v549 = vadd.f32 %v379, %v545
        %v550 = vxor.u32 %v449, 2147483648
        %v551 = vxor.u32 %v450, 2147483648
        %v552 = vmul.f32 %v550, 1.442695
        %v553 = vpow.pop %v552
        %v554 = vmul.f32 %v551, 1.442695
        %v555 = vpow.pop %v554
        %v556 = vadd.f32 %v553, 1.0
        %v557 = vadd.f32 %v555, 1.0
        %v558 = vrcp.pop %v556
        %v559 = vmul.f32 %v556, %v558
        %v560 = vsub.f32 1.0, %v559
        %v561 = vmul.f32 %v558, %v560
        %v562 = vadd.f32 %v558, %v561
        %vm563 = vweird.f32 %v556
        %vm564 = vweird.f32 %v558
        %vm565 = vmor %vm563, %vm564
        %v566 = vsel %vm565, %v558, %v562
        %v567 = vand.u32 2147483647, %v556
        %vm568 = vcmp.eq.f32.partialorder %v567, 8.507059e+37
        %v569 = vand.u32 %v556, 2147483648
        %v570 = vor.u32 1.1754944e-38, %v569
        %v571 = vsel %vm568, %v570, %v566
        %v572 = vmul.f32 1.0, %v571
        %v573 = vrcp.pop %v557
        %v574 = vmul.f32 %v557, %v573
        %v575 = vsub.f32 1.0, %v574
        %v576 = vmul.f32 %v573, %v575
        %v577 = vadd.f32 %v573, %v576
        %vm578 = vweird.f32 %v557
        %vm579 = vweird.f32 %v573
        %vm580 = vmor %vm578, %vm579
        %v581 = vsel %vm580, %v573, %v577
        %v582 = vand.u32 2147483647, %v557
        %vm583 = vcmp.eq.f32.partialorder %v582, 8.507059e+37
        %v584 = vand.u32 %v557, 2147483648
        %v585 = vor.u32 1.1754944e-38, %v584
        %v586 = vsel %vm583, %v585, %v581
        %v587 = vmul.f32 1.0, %v586
        %v588 = vxor.u32 %v482, 2147483648
        %v589 = vxor.u32 %v483, 2147483648
        %v590 = vmul.f32 %v588, 1.442695
        %v591 = vpow.pop %v590
        %v592 = vmul.f32 %v589, 1.442695
        %v593 = vpow.pop %v592
        %v594 = vadd.f32 %v591, 1.0
        %v595 = vadd.f32 %v593, 1.0
        %v596 = vrcp.pop %v594
        %v597 = vmul.f32 %v594, %v596
        %v598 = vsub.f32 1.0, %v597
        %v599 = vmul.f32 %v596, %v598
        %v600 = vadd.f32 %v596, %v599
        %vm601 = vweird.f32 %v594
        %vm602 = vweird.f32 %v596
        %vm603 = vmor %vm601, %vm602
        %v604 = vsel %vm603, %v596, %v600
        %v605 = vand.u32 2147483647, %v594
        %vm606 = vcmp.eq.f32.partialorder %v605, 8.507059e+37
        %v607 = vand.u32 %v594, 2147483648
        %v608 = vor.u32 1.1754944e-38, %v607
        %v609 = vsel %vm606, %v608, %v604
        %v610 = vmul.f32 1.0, %v609
        %v611 = vrcp.pop %v595
        %v612 = vmul.f32 %v595, %v611
        %v613 = vsub.f32 1.0, %v612
        %v614 = vmul.f32 %v611, %v613
        %v615 = vadd.f32 %v611, %v614
        %vm616 = vweird.f32 %v595
        %vm617 = vweird.f32 %v611
        %vm618 = vmor %vm616, %vm617
        %v619 = vsel %vm618, %v611, %v615
        %v620 = vand.u32 2147483647, %v595
        %vm621 = vcmp.eq.f32.partialorder %v620, 8.507059e+37
        %v622 = vand.u32 %v595, 2147483648
        %v623 = vor.u32 1.1754944e-38, %v622
        %v624 = vsel %vm621, %v623, %v619
        %v625 = vmul.f32 1.0, %v624
        %v626 = vtanh.pop %v515
        %v627 = vtanh.pop %v516
        %v628 = vxor.u32 %v548, 2147483648
        %v629 = vxor.u32 %v549, 2147483648
        %v630 = vmul.f32 %v628, 1.442695
        %v631 = vpow.pop %v630
        %v632 = vmul.f32 %v629, 1.442695
        %v633 = vpow.pop %v632
        %v634 = vadd.f32 %v631, 1.0
        %v635 = vadd.f32 %v633, 1.0
        %v636 = vrcp.pop %v634
        %v637 = vmul.f32 %v634, %v636
        %v638 = vsub.f32 1.0, %v637
        %v639 = vmul.f32 %v636, %v638
        %v640 = vadd.f32 %v636, %v639
        %vm641 = vweird.f32 %v634
        %vm642 = vweird.f32 %v636
        %vm643 = vmor %vm641, %vm642
        %v644 = vsel %vm643, %v636, %v640
        %v645 = vand.u32 2147483647, %v634
        %vm646 = vcmp.eq.f32.partialorder %v645, 8.507059e+37
        %v647 = vand.u32 %v634, 2147483648
        %v648 = vor.u32 1.1754944e-38, %v647
        %v649 = vsel %vm646, %v648, %v644
        %v650 = vmul.f32 1.0, %v649
        %v651 = vrcp.pop %v635
        %v652 = vmul.f32 %v635, %v651
        %v653 = vsub.f32 1.0, %v652
        %v654 = vmul.f32 %v651, %v653
        %v655 = vadd.f32 %v651, %v654
        %vm656 = vweird.f32 %v635
        %vm657 = vweird.f32 %v651
        %vm658 = vmor %vm656, %vm657
        %v659 = vsel %vm658, %v651, %v655
        %v660 = vand.u32 2147483647, %v635
        %vm661 = vcmp.eq.f32.partialorder %v660, 8.507059e+37
        %v662 = vand.u32 %v635, 2147483648
        %v663 = vor.u32 1.1754944e-38, %v662
        %v664 = vsel %vm661, %v663, %v659
        %v665 = vmul.f32 1.0, %v664
        %668 = vrot.lane.b32.xlu0 %v417, 32
        %v669 = vpop.permute.xlu0 %668
        %670 = vrot.lane.b32.xlu0 %v418, 32
        %v671 = vpop.permute.xlu0 %670
        %v674 = vmul.f32 %v610, %v669
        %v675 = vmul.f32 %v625, %v671
        %678 = vrot.lane.b32.xlu0 %v626, 64
        %v679 = vpop.permute.xlu0 %678
        %680 = vrot.lane.b32.xlu0 %v627, 64
        %v681 = vpop.permute.xlu0 %680
        %v684 = vmul.f32 %v572, %v679
        %v685 = vmul.f32 %v587, %v681
        %688 = vrot.lane.b32.xlu0 %v684, 32
        %v689 = vpop.permute.xlu0 %688
        %690 = vrot.lane.b32.xlu0 %v685, 32
        %v691 = vpop.permute.xlu0 %690
        %v694 = vadd.f32 %v674, %v689
        %v695 = vadd.f32 %v675, %v691
        %v696 = vtanh.pop %v694
        %v697 = vtanh.pop %v695
        %700 = vrot.lane.b32.xlu0 %v696, 64
        %v701 = vpop.permute.xlu0 %700
        %702 = vrot.lane.b32.xlu0 %v697, 64
        %v703 = vpop.permute.xlu0 %702
        %v706 = vmul.f32 %v650, %v701
        %v707 = vmul.f32 %v665, %v703
        %710 = vrot.lane.b32.xlu0 %v706, 32
        %v711 = vpop.permute.xlu0 %710
        %712 = vrot.lane.b32.xlu0 %v707, 32
        %v713 = vpop.permute.xlu0 %712
        %v714 = vsel %vm419, %v711, 0
        %v716 = vsel %vm419, %v713, 0
        %718 = vmatpush.msra.mxu0 0.0
        %719 = vmatpush.msra.mxu0 0.0
        %720 = vmatpush.msra.mxu0 0.0
        %721 = vmatpush.msra.mxu0 0.0
        %722 = vmatpush.msra.mxu0 0.0
        %723 = vmatpush.msra.mxu0 0.0
        %724 = vmatpush.msra.mxu0 0.0
        %725 = vmatpush.msra.mxu0 0.0
        %726 = vmatpush.msra.mxu0 0.0
        %727 = vmatpush.msra.mxu0 0.0
        %728 = vmatpush.msra.mxu0 0.0
        %729 = vmatpush.msra.mxu0 0.0
        %730 = vmatpush.msra.mxu0 %v402
        %731 = vmatpush.msra.mxu0 %v401
        %732 = vmatpush.msra.mxu0 %v400
        %733 = vmatpush.msra.mxu0 %v399
        %734 = vmatmul.f32.gmra.mxu0 %v714
        %v735 = vpop.f32.mrf.mxu0
        %v736 = vadd.f32 0.0, %v735
        %737 = vmatmul.f32.gmra.mxu0 %v716
        %v738 = vpop.f32.mrf.mxu0
        %v739 = vadd.f32 0.0, %v738
        %740 = vdwg.mxu0
        %v741 = vadd.f32 %v382, %v736
        %v742 = vadd.f32 %v385, %v739
        %743 = vmatpush.msra.mxu0 0.0
        %744 = vmatpush.msra.mxu0 0.0
        %745 = vmatpush.msra.mxu0 0.0
        %746 = vmatpush.msra.mxu0 0.0
        %747 = vmatpush.msra.mxu0 0.0
        %748 = vmatpush.msra.mxu0 0.0
        %749 = vmatpush.msra.mxu0 0.0
        %750 = vmatpush.msra.mxu0 0.0
        %751 = vmatpush.msra.mxu0 0.0
        %752 = vmatpush.msra.mxu0 0.0
        %753 = vmatpush.msra.mxu0 0.0
        %754 = vmatpush.msra.mxu0 0.0
        %755 = vmatpush.msra.mxu0 %v406
        %756 = vmatpush.msra.mxu0 %v405
        %757 = vmatpush.msra.mxu0 %v404
        %758 = vmatpush.msra.mxu0 %v403
        %759 = vmatmul.f32.gmra.mxu0 %v714
        %v760 = vpop.f32.mrf.mxu0
        %v761 = vadd.f32 0.0, %v760
        %762 = vmatmul.f32.gmra.mxu0 %v716
        %v763 = vpop.f32.mrf.mxu0
        %v764 = vadd.f32 0.0, %v763
        %765 = vdwg.mxu0
        %768 = vrot.lane.b32.xlu0 %v761, 32
        %v769 = vpop.permute.xlu0 %768
        %770 = vrot.lane.b32.xlu0 %v764, 32
        %v771 = vpop.permute.xlu0 %770
        %v774 = vadd.f32 %v382, %v769
        %v775 = vadd.f32 %v385, %v771
        %776 = vmatpush.msra.mxu0 0.0
        %777 = vmatpush.msra.mxu0 0.0
        %778 = vmatpush.msra.mxu0 0.0
        %779 = vmatpush.msra.mxu0 0.0
        %780 = vmatpush.msra.mxu0 0.0
        %781 = vmatpush.msra.mxu0 0.0
        %782 = vmatpush.msra.mxu0 0.0
        %783 = vmatpush.msra.mxu0 0.0
        %784 = vmatpush.msra.mxu0 0.0
        %785 = vmatpush.msra.mxu0 0.0
        %786 = vmatpush.msra.mxu0 0.0
        %787 = vmatpush.msra.mxu0 0.0
        %788 = vmatpush.msra.mxu0 %v410
        %789 = vmatpush.msra.mxu0 %v409
        %790 = vmatpush.msra.mxu0 %v408
        %791 = vmatpush.msra.mxu0 %v407
        %792 = vmatmul.f32.gmra.mxu0 %v714
        %v793 = vpop.f32.mrf.mxu0
        %v794 = vadd.f32 0.0, %v793
        %795 = vmatmul.f32.gmra.mxu0 %v716
        %v796 = vpop.f32.mrf.mxu0
        %v797 = vadd.f32 0.0, %v796
        %798 = vdwg.mxu0
        %801 = vrot.lane.b32.xlu0 %v794, 64
        %v802 = vpop.permute.xlu0 %801
        %803 = vrot.lane.b32.xlu0 %v797, 64
        %v804 = vpop.permute.xlu0 %803
        %v807 = vadd.f32 %v382, %v802
        %v808 = vadd.f32 %v385, %v804
        %809 = vmatpush.msra.mxu0 0.0
        %810 = vmatpush.msra.mxu0 0.0
        %811 = vmatpush.msra.mxu0 0.0
        %812 = vmatpush.msra.mxu0 0.0
        %813 = vmatpush.msra.mxu0 0.0
        %814 = vmatpush.msra.mxu0 0.0
        %815 = vmatpush.msra.mxu0 0.0
        %816 = vmatpush.msra.mxu0 0.0
        %817 = vmatpush.msra.mxu0 0.0
        %818 = vmatpush.msra.mxu0 0.0
        %819 = vmatpush.msra.mxu0 0.0
        %820 = vmatpush.msra.mxu0 0.0
        %821 = vmatpush.msra.mxu0 %v414
        %822 = vmatpush.msra.mxu0 %v413
        %823 = vmatpush.msra.mxu0 %v412
        %824 = vmatpush.msra.mxu0 %v411
        %825 = vmatmul.f32.gmra.mxu0 %v714
        %v826 = vpop.f32.mrf.mxu0
        %v827 = vadd.f32 0.0, %v826
        %828 = vmatmul.f32.gmra.mxu0 %v716
        %v829 = vpop.f32.mrf.mxu0
        %v830 = vadd.f32 0.0, %v829
        %831 = vdwg.mxu0
        %834 = vrot.lane.b32.xlu0 %v827, 96
        %v835 = vpop.permute.xlu0 %834
        %836 = vrot.lane.b32.xlu0 %v830, 96
        %v837 = vpop.permute.xlu0 %836
        %v840 = vadd.f32 %v382, %v835
        %v841 = vadd.f32 %v385, %v837
        %v842 = vxor.u32 %v741, 2147483648
        %v843 = vxor.u32 %v742, 2147483648
        %v844 = vmul.f32 %v842, 1.442695
        %v845 = vpow.pop %v844
        %v846 = vmul.f32 %v843, 1.442695
        %v847 = vpow.pop %v846
        %v848 = vadd.f32 %v845, 1.0
        %v849 = vadd.f32 %v847, 1.0
        %v850 = vrcp.pop %v848
        %v851 = vmul.f32 %v848, %v850
        %v852 = vsub.f32 1.0, %v851
        %v853 = vmul.f32 %v850, %v852
        %v854 = vadd.f32 %v850, %v853
        %vm855 = vweird.f32 %v848
        %vm856 = vweird.f32 %v850
        %vm857 = vmor %vm855, %vm856
        %v858 = vsel %vm857, %v850, %v854
        %v859 = vand.u32 2147483647, %v848
        %vm860 = vcmp.eq.f32.partialorder %v859, 8.507059e+37
        %v861 = vand.u32 %v848, 2147483648
        %v862 = vor.u32 1.1754944e-38, %v861
        %v863 = vsel %vm860, %v862, %v858
        %v864 = vmul.f32 1.0, %v863
        %v865 = vrcp.pop %v849
        %v866 = vmul.f32 %v849, %v865
        %v867 = vsub.f32 1.0, %v866
        %v868 = vmul.f32 %v865, %v867
        %v869 = vadd.f32 %v865, %v868
        %vm870 = vweird.f32 %v849
        %vm871 = vweird.f32 %v865
        %vm872 = vmor %vm870, %vm871
        %v873 = vsel %vm872, %v865, %v869
        %v874 = vand.u32 2147483647, %v849
        %vm875 = vcmp.eq.f32.partialorder %v874, 8.507059e+37
        %v876 = vand.u32 %v849, 2147483648
        %v877 = vor.u32 1.1754944e-38, %v876
        %v878 = vsel %vm875, %v877, %v873
        %v879 = vmul.f32 1.0, %v878
        %v880 = vxor.u32 %v774, 2147483648
        %v881 = vxor.u32 %v775, 2147483648
        %v882 = vmul.f32 %v880, 1.442695
        %v883 = vpow.pop %v882
        %v884 = vmul.f32 %v881, 1.442695
        %v885 = vpow.pop %v884
        %v886 = vadd.f32 %v883, 1.0
        %v887 = vadd.f32 %v885, 1.0
        %v888 = vrcp.pop %v886
        %v889 = vmul.f32 %v886, %v888
        %v890 = vsub.f32 1.0, %v889
        %v891 = vmul.f32 %v888, %v890
        %v892 = vadd.f32 %v888, %v891
        %vm893 = vweird.f32 %v886
        %vm894 = vweird.f32 %v888
        %vm895 = vmor %vm893, %vm894
        %v896 = vsel %vm895, %v888, %v892
        %v897 = vand.u32 2147483647, %v886
        %vm898 = vcmp.eq.f32.partialorder %v897, 8.507059e+37
        %v899 = vand.u32 %v886, 2147483648
        %v900 = vor.u32 1.1754944e-38, %v899
        %v901 = vsel %vm898, %v900, %v896
        %v902 = vmul.f32 1.0, %v901
        %v903 = vrcp.pop %v887
        %v904 = vmul.f32 %v887, %v903
        %v905 = vsub.f32 1.0, %v904
        %v906 = vmul.f32 %v903, %v905
        %v907 = vadd.f32 %v903, %v906
        %vm908 = vweird.f32 %v887
        %vm909 = vweird.f32 %v903
        %vm910 = vmor %vm908, %vm909
        %v911 = vsel %vm910, %v903, %v907
        %v912 = vand.u32 2147483647, %v887
        %vm913 = vcmp.eq.f32.partialorder %v912, 8.507059e+37
        %v914 = vand.u32 %v887, 2147483648
        %v915 = vor.u32 1.1754944e-38, %v914
        %v916 = vsel %vm913, %v915, %v911
        %v917 = vmul.f32 1.0, %v916
        %v918 = vtanh.pop %v807
        %v919 = vtanh.pop %v808
        %v920 = vxor.u32 %v840, 2147483648
        %v921 = vxor.u32 %v841, 2147483648
        %v922 = vmul.f32 %v920, 1.442695
        %v923 = vpow.pop %v922
        %v924 = vmul.f32 %v921, 1.442695
        %v925 = vpow.pop %v924
        %v926 = vadd.f32 %v923, 1.0
        %v927 = vadd.f32 %v925, 1.0
        %v928 = vrcp.pop %v926
        %v929 = vmul.f32 %v926, %v928
        %v930 = vsub.f32 1.0, %v929
        %v931 = vmul.f32 %v928, %v930
        %v932 = vadd.f32 %v928, %v931
        %vm933 = vweird.f32 %v926
        %vm934 = vweird.f32 %v928
        %vm935 = vmor %vm933, %vm934
        %v936 = vsel %vm935, %v928, %v932
        %v937 = vand.u32 2147483647, %v926
        %vm938 = vcmp.eq.f32.partialorder %v937, 8.507059e+37
        %v939 = vand.u32 %v926, 2147483648
        %v940 = vor.u32 1.1754944e-38, %v939
        %v941 = vsel %vm938, %v940, %v936
        %v942 = vmul.f32 1.0, %v941
        %v943 = vrcp.pop %v927
        %v944 = vmul.f32 %v927, %v943
        %v945 = vsub.f32 1.0, %v944
        %v946 = vmul.f32 %v943, %v945
        %v947 = vadd.f32 %v943, %v946
        %vm948 = vweird.f32 %v927
        %vm949 = vweird.f32 %v943
        %vm950 = vmor %vm948, %vm949
        %v951 = vsel %vm950, %v943, %v947
        %v952 = vand.u32 2147483647, %v927
        %vm953 = vcmp.eq.f32.partialorder %v952, 8.507059e+37
        %v954 = vand.u32 %v927, 2147483648
        %v955 = vor.u32 1.1754944e-38, %v954
        %v956 = vsel %vm953, %v955, %v951
        %v957 = vmul.f32 1.0, %v956
        %v958 = vmul.f32 %v902, %v694
        %v959 = vmul.f32 %v917, %v695
        %962 = vrot.lane.b32.xlu0 %v918, 64
        %v963 = vpop.permute.xlu0 %962
        %964 = vrot.lane.b32.xlu0 %v919, 64
        %v965 = vpop.permute.xlu0 %964
        %v968 = vmul.f32 %v864, %v963
        %v969 = vmul.f32 %v879, %v965
        %972 = vrot.lane.b32.xlu0 %v968, 32
        %v973 = vpop.permute.xlu0 %972
        %974 = vrot.lane.b32.xlu0 %v969, 32
        %v975 = vpop.permute.xlu0 %974
        %v978 = vadd.f32 %v958, %v973
        %v979 = vadd.f32 %v959, %v975
        %v980 = vtanh.pop %v978
        %v981 = vtanh.pop %v979
        %984 = vrot.lane.b32.xlu0 %v980, 64
        %v985 = vpop.permute.xlu0 %984
        %986 = vrot.lane.b32.xlu0 %v981, 64
        %v987 = vpop.permute.xlu0 %986
        %v990 = vmul.f32 %v942, %v985
        %v991 = vmul.f32 %v957, %v987
        %994 = vrot.lane.b32.xlu0 %v990, 32
        %v995 = vpop.permute.xlu0 %994
        %996 = vrot.lane.b32.xlu0 %v991, 32
        %v997 = vpop.permute.xlu0 %996
        %v998 = vsel %vm419, %v995, 0
        %v1000 = vsel %vm419, %v997, 0
        %1002 = vmatpush.msra.mxu0 0.0
        %1003 = vmatpush.msra.mxu0 0.0
        %1004 = vmatpush.msra.mxu0 0.0
        %1005 = vmatpush.msra.mxu0 0.0
        %1006 = vmatpush.msra.mxu0 0.0
        %1007 = vmatpush.msra.mxu0 0.0
        %1008 = vmatpush.msra.mxu0 0.0
        %1009 = vmatpush.msra.mxu0 0.0
        %1010 = vmatpush.msra.mxu0 0.0
        %1011 = vmatpush.msra.mxu0 0.0
        %1012 = vmatpush.msra.mxu0 0.0
        %1013 = vmatpush.msra.mxu0 0.0
        %1014 = vmatpush.msra.mxu0 %v402
        %1015 = vmatpush.msra.mxu0 %v401
        %1016 = vmatpush.msra.mxu0 %v400
        %1017 = vmatpush.msra.mxu0 %v399
        %1018 = vmatmul.f32.gmra.mxu0 %v998
        %v1019 = vpop.f32.mrf.mxu0
        %v1020 = vadd.f32 0.0, %v1019
        %1021 = vmatmul.f32.gmra.mxu0 %v1000
        %v1022 = vpop.f32.mrf.mxu0
        %v1023 = vadd.f32 0.0, %v1022
        %1024 = vdwg.mxu0
        %v1025 = vadd.f32 %v388, %v1020
        %v1026 = vadd.f32 %v391, %v1023
        %1027 = vmatpush.msra.mxu0 0.0
        %1028 = vmatpush.msra.mxu0 0.0
        %1029 = vmatpush.msra.mxu0 0.0
        %1030 = vmatpush.msra.mxu0 0.0
        %1031 = vmatpush.msra.mxu0 0.0
        %1032 = vmatpush.msra.mxu0 0.0
        %1033 = vmatpush.msra.mxu0 0.0
        %1034 = vmatpush.msra.mxu0 0.0
        %1035 = vmatpush.msra.mxu0 0.0
        %1036 = vmatpush.msra.mxu0 0.0
        %1037 = vmatpush.msra.mxu0 0.0
        %1038 = vmatpush.msra.mxu0 0.0
        %1039 = vmatpush.msra.mxu0 %v406
        %1040 = vmatpush.msra.mxu0 %v405
        %1041 = vmatpush.msra.mxu0 %v404
        %1042 = vmatpush.msra.mxu0 %v403
        %1043 = vmatmul.f32.gmra.mxu0 %v998
        %v1044 = vpop.f32.mrf.mxu0
        %v1045 = vadd.f32 0.0, %v1044
        %1046 = vmatmul.f32.gmra.mxu0 %v1000
        %v1047 = vpop.f32.mrf.mxu0
        %v1048 = vadd.f32 0.0, %v1047
        %1049 = vdwg.mxu0
        %1052 = vrot.lane.b32.xlu0 %v1045, 32
        %v1053 = vpop.permute.xlu0 %1052
        %1054 = vrot.lane.b32.xlu0 %v1048, 32
        %v1055 = vpop.permute.xlu0 %1054
        %v1058 = vadd.f32 %v388, %v1053
        %v1059 = vadd.f32 %v391, %v1055
        %1060 = vmatpush.msra.mxu0 0.0
        %1061 = vmatpush.msra.mxu0 0.0
        %1062 = vmatpush.msra.mxu0 0.0
        %1063 = vmatpush.msra.mxu0 0.0
        %1064 = vmatpush.msra.mxu0 0.0
        %1065 = vmatpush.msra.mxu0 0.0
        %1066 = vmatpush.msra.mxu0 0.0
        %1067 = vmatpush.msra.mxu0 0.0
        %1068 = vmatpush.msra.mxu0 0.0
        %1069 = vmatpush.msra.mxu0 0.0
        %1070 = vmatpush.msra.mxu0 0.0
        %1071 = vmatpush.msra.mxu0 0.0
        %1072 = vmatpush.msra.mxu0 %v410
        %1073 = vmatpush.msra.mxu0 %v409
        %1074 = vmatpush.msra.mxu0 %v408
        %1075 = vmatpush.msra.mxu0 %v407
        %1076 = vmatmul.f32.gmra.mxu0 %v998
        %v1077 = vpop.f32.mrf.mxu0
        %v1078 = vadd.f32 0.0, %v1077
        %1079 = vmatmul.f32.gmra.mxu0 %v1000
        %v1080 = vpop.f32.mrf.mxu0
        %v1081 = vadd.f32 0.0, %v1080
        %1082 = vdwg.mxu0
        %1085 = vrot.lane.b32.xlu0 %v1078, 64
        %v1086 = vpop.permute.xlu0 %1085
        %1087 = vrot.lane.b32.xlu0 %v1081, 64
        %v1088 = vpop.permute.xlu0 %1087
        %v1091 = vadd.f32 %v388, %v1086
        %v1092 = vadd.f32 %v391, %v1088
        %1093 = vmatpush.msra.mxu0 0.0
        %1094 = vmatpush.msra.mxu0 0.0
        %1095 = vmatpush.msra.mxu0 0.0
        %1096 = vmatpush.msra.mxu0 0.0
        %1097 = vmatpush.msra.mxu0 0.0
        %1098 = vmatpush.msra.mxu0 0.0
        %1099 = vmatpush.msra.mxu0 0.0
        %1100 = vmatpush.msra.mxu0 0.0
        %1101 = vmatpush.msra.mxu0 0.0
        %1102 = vmatpush.msra.mxu0 0.0
        %1103 = vmatpush.msra.mxu0 0.0
        %1104 = vmatpush.msra.mxu0 0.0
        %1105 = vmatpush.msra.mxu0 %v414
        %1106 = vmatpush.msra.mxu0 %v413
        %1107 = vmatpush.msra.mxu0 %v412
        %1108 = vmatpush.msra.mxu0 %v411
        %1109 = vmatmul.f32.gmra.mxu0 %v998
        %v1110 = vpop.f32.mrf.mxu0
        %v1111 = vadd.f32 0.0, %v1110
        %1112 = vmatmul.f32.gmra.mxu0 %v1000
        %v1113 = vpop.f32.mrf.mxu0
        %v1114 = vadd.f32 0.0, %v1113
        %1115 = vdwg.mxu0
        %1118 = vrot.lane.b32.xlu0 %v1111, 96
        %v1119 = vpop.permute.xlu0 %1118
        %1120 = vrot.lane.b32.xlu0 %v1114, 96
        %v1121 = vpop.permute.xlu0 %1120
        %v1124 = vadd.f32 %v388, %v1119
        %v1125 = vadd.f32 %v391, %v1121
        %v1126 = vxor.u32 %v1025, 2147483648
        %v1127 = vxor.u32 %v1026, 2147483648
        %v1128 = vmul.f32 %v1126, 1.442695
        %v1129 = vpow.pop %v1128
        %v1130 = vmul.f32 %v1127, 1.442695
        %v1131 = vpow.pop %v1130
        %v1132 = vadd.f32 %v1129, 1.0
        %v1133 = vadd.f32 %v1131, 1.0
        %v1134 = vrcp.pop %v1132
        %v1135 = vmul.f32 %v1132, %v1134
        %v1136 = vsub.f32 1.0, %v1135
        %v1137 = vmul.f32 %v1134, %v1136
        %v1138 = vadd.f32 %v1134, %v1137
        %vm1139 = vweird.f32 %v1132
        %vm1140 = vweird.f32 %v1134
        %vm1141 = vmor %vm1139, %vm1140
        %v1142 = vsel %vm1141, %v1134, %v1138
        %v1143 = vand.u32 2147483647, %v1132
        %vm1144 = vcmp.eq.f32.partialorder %v1143, 8.507059e+37
        %v1145 = vand.u32 %v1132, 2147483648
        %v1146 = vor.u32 1.1754944e-38, %v1145
        %v1147 = vsel %vm1144, %v1146, %v1142
        %v1148 = vmul.f32 1.0, %v1147
        %v1149 = vrcp.pop %v1133
        %v1150 = vmul.f32 %v1133, %v1149
        %v1151 = vsub.f32 1.0, %v1150
        %v1152 = vmul.f32 %v1149, %v1151
        %v1153 = vadd.f32 %v1149, %v1152
        %vm1154 = vweird.f32 %v1133
        %vm1155 = vweird.f32 %v1149
        %vm1156 = vmor %vm1154, %vm1155
        %v1157 = vsel %vm1156, %v1149, %v1153
        %v1158 = vand.u32 2147483647, %v1133
        %vm1159 = vcmp.eq.f32.partialorder %v1158, 8.507059e+37
        %v1160 = vand.u32 %v1133, 2147483648
        %v1161 = vor.u32 1.1754944e-38, %v1160
        %v1162 = vsel %vm1159, %v1161, %v1157
        %v1163 = vmul.f32 1.0, %v1162
        %v1164 = vxor.u32 %v1058, 2147483648
        %v1165 = vxor.u32 %v1059, 2147483648
        %v1166 = vmul.f32 %v1164, 1.442695
        %v1167 = vpow.pop %v1166
        %v1168 = vmul.f32 %v1165, 1.442695
        %v1169 = vpow.pop %v1168
        %v1170 = vadd.f32 %v1167, 1.0
        %v1171 = vadd.f32 %v1169, 1.0
        %v1172 = vrcp.pop %v1170
        %v1173 = vmul.f32 %v1170, %v1172
        %v1174 = vsub.f32 1.0, %v1173
        %v1175 = vmul.f32 %v1172, %v1174
        %v1176 = vadd.f32 %v1172, %v1175
        %vm1177 = vweird.f32 %v1170
        %vm1178 = vweird.f32 %v1172
        %vm1179 = vmor %vm1177, %vm1178
        %v1180 = vsel %vm1179, %v1172, %v1176
        %v1181 = vand.u32 2147483647, %v1170
        %vm1182 = vcmp.eq.f32.partialorder %v1181, 8.507059e+37
        %v1183 = vand.u32 %v1170, 2147483648
        %v1184 = vor.u32 1.1754944e-38, %v1183
        %v1185 = vsel %vm1182, %v1184, %v1180
        %v1186 = vmul.f32 1.0, %v1185
        %v1187 = vrcp.pop %v1171
        %v1188 = vmul.f32 %v1171, %v1187
        %v1189 = vsub.f32 1.0, %v1188
        %v1190 = vmul.f32 %v1187, %v1189
        %v1191 = vadd.f32 %v1187, %v1190
        %vm1192 = vweird.f32 %v1171
        %vm1193 = vweird.f32 %v1187
        %vm1194 = vmor %vm1192, %vm1193
        %v1195 = vsel %vm1194, %v1187, %v1191
        %v1196 = vand.u32 2147483647, %v1171
        %vm1197 = vcmp.eq.f32.partialorder %v1196, 8.507059e+37
        %v1198 = vand.u32 %v1171, 2147483648
        %v1199 = vor.u32 1.1754944e-38, %v1198
        %v1200 = vsel %vm1197, %v1199, %v1195
        %v1201 = vmul.f32 1.0, %v1200
        %v1202 = vtanh.pop %v1091
        %v1203 = vtanh.pop %v1092
        %v1204 = vxor.u32 %v1124, 2147483648
        %v1205 = vxor.u32 %v1125, 2147483648
        %v1206 = vmul.f32 %v1204, 1.442695
        %v1207 = vpow.pop %v1206
        %v1208 = vmul.f32 %v1205, 1.442695
        %v1209 = vpow.pop %v1208
        %v1210 = vadd.f32 %v1207, 1.0
        %v1211 = vadd.f32 %v1209, 1.0
        %v1212 = vrcp.pop %v1210
        %v1213 = vmul.f32 %v1210, %v1212
        %v1214 = vsub.f32 1.0, %v1213
        %v1215 = vmul.f32 %v1212, %v1214
        %v1216 = vadd.f32 %v1212, %v1215
        %vm1217 = vweird.f32 %v1210
        %vm1218 = vweird.f32 %v1212
        %vm1219 = vmor %vm1217, %vm1218
        %v1220 = vsel %vm1219, %v1212, %v1216
        %v1221 = vand.u32 2147483647, %v1210
        %vm1222 = vcmp.eq.f32.partialorder %v1221, 8.507059e+37
        %v1223 = vand.u32 %v1210, 2147483648
        %v1224 = vor.u32 1.1754944e-38, %v1223
        %v1225 = vsel %vm1222, %v1224, %v1220
        %v1226 = vmul.f32 1.0, %v1225
        %v1227 = vrcp.pop %v1211
        %v1228 = vmul.f32 %v1211, %v1227
        %v1229 = vsub.f32 1.0, %v1228
        %v1230 = vmul.f32 %v1227, %v1229
        %v1231 = vadd.f32 %v1227, %v1230
        %vm1232 = vweird.f32 %v1211
        %vm1233 = vweird.f32 %v1227
        %vm1234 = vmor %vm1232, %vm1233
        %v1235 = vsel %vm1234, %v1227, %v1231
        %v1236 = vand.u32 2147483647, %v1211
        %vm1237 = vcmp.eq.f32.partialorder %v1236, 8.507059e+37
        %v1238 = vand.u32 %v1211, 2147483648
        %v1239 = vor.u32 1.1754944e-38, %v1238
        %v1240 = vsel %vm1237, %v1239, %v1235
        %v1241 = vmul.f32 1.0, %v1240
        %v1242 = vmul.f32 %v1186, %v978
        %v1243 = vmul.f32 %v1201, %v979
        %1246 = vrot.lane.b32.xlu0 %v1202, 64
        %v1247 = vpop.permute.xlu0 %1246
        %1248 = vrot.lane.b32.xlu0 %v1203, 64
        %v1249 = vpop.permute.xlu0 %1248
        %v1252 = vmul.f32 %v1148, %v1247
        %v1253 = vmul.f32 %v1163, %v1249
        %1256 = vrot.lane.b32.xlu0 %v1252, 32
        %v1257 = vpop.permute.xlu0 %1256
        %1258 = vrot.lane.b32.xlu0 %v1253, 32
        %v1259 = vpop.permute.xlu0 %1258
        %v1262 = vadd.f32 %v1242, %v1257
        %v1263 = vadd.f32 %v1243, %v1259
        %v1264 = vtanh.pop %v1262
        %v1265 = vtanh.pop %v1263
        %1268 = vrot.lane.b32.xlu0 %v1264, 64
        %v1269 = vpop.permute.xlu0 %1268
        %1270 = vrot.lane.b32.xlu0 %v1265, 64
        %v1271 = vpop.permute.xlu0 %1270
        %v1274 = vmul.f32 %v1226, %v1269
        %v1275 = vmul.f32 %v1241, %v1271
        %1278 = vrot.lane.b32.xlu0 %v1274, 32
        %v1279 = vpop.permute.xlu0 %1278
        %1280 = vrot.lane.b32.xlu0 %v1275, 32
        %v1281 = vpop.permute.xlu0 %1280
        %v1282 = vsel %vm419, %v1279, 0
        %v1284 = vsel %vm419, %v1281, 0
        %1286 = vmatpush.msra.mxu0 0.0
        %1287 = vmatpush.msra.mxu0 0.0
        %1288 = vmatpush.msra.mxu0 0.0
        %1289 = vmatpush.msra.mxu0 0.0
        %1290 = vmatpush.msra.mxu0 0.0
        %1291 = vmatpush.msra.mxu0 0.0
        %1292 = vmatpush.msra.mxu0 0.0
        %1293 = vmatpush.msra.mxu0 0.0
        %1294 = vmatpush.msra.mxu0 0.0
        %1295 = vmatpush.msra.mxu0 0.0
        %1296 = vmatpush.msra.mxu0 0.0
        %1297 = vmatpush.msra.mxu0 0.0
        %1298 = vmatpush.msra.mxu0 %v402
        %1299 = vmatpush.msra.mxu0 %v401
        %1300 = vmatpush.msra.mxu0 %v400
        %1301 = vmatpush.msra.mxu0 %v399
        %1302 = vmatmul.f32.gmra.mxu0 %v1282
        %v1303 = vpop.f32.mrf.mxu0
        %v1304 = vadd.f32 0.0, %v1303
        %1305 = vmatmul.f32.gmra.mxu0 %v1284
        %v1306 = vpop.f32.mrf.mxu0
        %v1307 = vadd.f32 0.0, %v1306
        %1308 = vdwg.mxu0
        %v1309 = vadd.f32 %v394, %v1304
        %v1310 = vadd.f32 %v397, %v1307
        %1311 = vmatpush.msra.mxu0 0.0
        %1312 = vmatpush.msra.mxu0 0.0
        %1313 = vmatpush.msra.mxu0 0.0
        %1314 = vmatpush.msra.mxu0 0.0
        %1315 = vmatpush.msra.mxu0 0.0
        %1316 = vmatpush.msra.mxu0 0.0
        %1317 = vmatpush.msra.mxu0 0.0
        %1318 = vmatpush.msra.mxu0 0.0
        %1319 = vmatpush.msra.mxu0 0.0
        %1320 = vmatpush.msra.mxu0 0.0
        %1321 = vmatpush.msra.mxu0 0.0
        %1322 = vmatpush.msra.mxu0 0.0
        %1323 = vmatpush.msra.mxu0 %v406
        %1324 = vmatpush.msra.mxu0 %v405
        %1325 = vmatpush.msra.mxu0 %v404
        %1326 = vmatpush.msra.mxu0 %v403
        %1327 = vmatmul.f32.gmra.mxu0 %v1282
        %v1328 = vpop.f32.mrf.mxu0
        %v1329 = vadd.f32 0.0, %v1328
        %1330 = vmatmul.f32.gmra.mxu0 %v1284
        %v1331 = vpop.f32.mrf.mxu0
        %v1332 = vadd.f32 0.0, %v1331
        %1333 = vdwg.mxu0
        %1336 = vrot.lane.b32.xlu0 %v1329, 32
        %v1337 = vpop.permute.xlu0 %1336
        %1338 = vrot.lane.b32.xlu0 %v1332, 32
        %v1339 = vpop.permute.xlu0 %1338
        %v1342 = vadd.f32 %v394, %v1337
        %v1343 = vadd.f32 %v397, %v1339
        %1344 = vmatpush.msra.mxu0 0.0
        %1345 = vmatpush.msra.mxu0 0.0
        %1346 = vmatpush.msra.mxu0 0.0
        %1347 = vmatpush.msra.mxu0 0.0
        %1348 = vmatpush.msra.mxu0 0.0
        %1349 = vmatpush.msra.mxu0 0.0
        %1350 = vmatpush.msra.mxu0 0.0
        %1351 = vmatpush.msra.mxu0 0.0
        %1352 = vmatpush.msra.mxu0 0.0
        %1353 = vmatpush.msra.mxu0 0.0
        %1354 = vmatpush.msra.mxu0 0.0
        %1355 = vmatpush.msra.mxu0 0.0
        %1356 = vmatpush.msra.mxu0 %v410
        %1357 = vmatpush.msra.mxu0 %v409
        %1358 = vmatpush.msra.mxu0 %v408
        %1359 = vmatpush.msra.mxu0 %v407
        %1360 = vmatmul.f32.gmra.mxu0 %v1282
        %v1361 = vpop.f32.mrf.mxu0
        %v1362 = vadd.f32 0.0, %v1361
        %1363 = vmatmul.f32.gmra.mxu0 %v1284
        %v1364 = vpop.f32.mrf.mxu0
        %v1365 = vadd.f32 0.0, %v1364
        %1366 = vdwg.mxu0
        %1369 = vrot.lane.b32.xlu0 %v1362, 64
        %v1370 = vpop.permute.xlu0 %1369
        %1371 = vrot.lane.b32.xlu0 %v1365, 64
        %v1372 = vpop.permute.xlu0 %1371
        %v1375 = vadd.f32 %v394, %v1370
        %v1376 = vadd.f32 %v397, %v1372
        %1377 = vmatpush.msra.mxu0 0.0
        %1378 = vmatpush.msra.mxu0 0.0
        %1379 = vmatpush.msra.mxu0 0.0
        %1380 = vmatpush.msra.mxu0 0.0
        %1381 = vmatpush.msra.mxu0 0.0
        %1382 = vmatpush.msra.mxu0 0.0
        %1383 = vmatpush.msra.mxu0 0.0
        %1384 = vmatpush.msra.mxu0 0.0
        %1385 = vmatpush.msra.mxu0 0.0
        %1386 = vmatpush.msra.mxu0 0.0
        %1387 = vmatpush.msra.mxu0 0.0
        %1388 = vmatpush.msra.mxu0 0.0
        %1389 = vmatpush.msra.mxu0 %v414
        %1390 = vmatpush.msra.mxu0 %v413
        %1391 = vmatpush.msra.mxu0 %v412
        %1392 = vmatpush.msra.mxu0 %v411
        %1393 = vmatmul.f32.gmra.mxu0 %v1282
        %v1394 = vpop.f32.mrf.mxu0
        %v1395 = vadd.f32 0.0, %v1394
        %1396 = vmatmul.f32.gmra.mxu0 %v1284
        %v1397 = vpop.f32.mrf.mxu0
        %v1398 = vadd.f32 0.0, %v1397
        %1399 = vdwg.mxu0
        %1402 = vrot.lane.b32.xlu0 %v1395, 96
        %v1403 = vpop.permute.xlu0 %1402
        %1404 = vrot.lane.b32.xlu0 %v1398, 96
        %v1405 = vpop.permute.xlu0 %1404
        %v1408 = vadd.f32 %v394, %v1403
        %v1409 = vadd.f32 %v397, %v1405
        %v1410 = vxor.u32 %v1309, 2147483648
        %v1411 = vxor.u32 %v1310, 2147483648
        %v1412 = vmul.f32 %v1410, 1.442695
        %v1413 = vpow.pop %v1412
        %v1414 = vmul.f32 %v1411, 1.442695
        %v1415 = vpow.pop %v1414
        %v1416 = vadd.f32 %v1413, 1.0
        %v1417 = vadd.f32 %v1415, 1.0
        %v1418 = vrcp.pop %v1416
        %v1419 = vmul.f32 %v1416, %v1418
        %v1420 = vsub.f32 1.0, %v1419
        %v1421 = vmul.f32 %v1418, %v1420
        %v1422 = vadd.f32 %v1418, %v1421
        %vm1423 = vweird.f32 %v1416
        %vm1424 = vweird.f32 %v1418
        %vm1425 = vmor %vm1423, %vm1424
        %v1426 = vsel %vm1425, %v1418, %v1422
        %v1427 = vand.u32 2147483647, %v1416
        %vm1428 = vcmp.eq.f32.partialorder %v1427, 8.507059e+37
        %v1429 = vand.u32 %v1416, 2147483648
        %v1430 = vor.u32 1.1754944e-38, %v1429
        %v1431 = vsel %vm1428, %v1430, %v1426
        %v1432 = vmul.f32 1.0, %v1431
        %v1433 = vrcp.pop %v1417
        %v1434 = vmul.f32 %v1417, %v1433
        %v1435 = vsub.f32 1.0, %v1434
        %v1436 = vmul.f32 %v1433, %v1435
        %v1437 = vadd.f32 %v1433, %v1436
        %vm1438 = vweird.f32 %v1417
        %vm1439 = vweird.f32 %v1433
        %vm1440 = vmor %vm1438, %vm1439
        %v1441 = vsel %vm1440, %v1433, %v1437
        %v1442 = vand.u32 2147483647, %v1417
        %vm1443 = vcmp.eq.f32.partialorder %v1442, 8.507059e+37
        %v1444 = vand.u32 %v1417, 2147483648
        %v1445 = vor.u32 1.1754944e-38, %v1444
        %v1446 = vsel %vm1443, %v1445, %v1441
        %v1447 = vmul.f32 1.0, %v1446
        %v1448 = vxor.u32 %v1342, 2147483648
        %v1449 = vxor.u32 %v1343, 2147483648
        %v1450 = vmul.f32 %v1448, 1.442695
        %v1451 = vpow.pop %v1450
        %v1452 = vmul.f32 %v1449, 1.442695
        %v1453 = vpow.pop %v1452
        %v1454 = vadd.f32 %v1451, 1.0
        %v1455 = vadd.f32 %v1453, 1.0
        %v1456 = vrcp.pop %v1454
        %v1457 = vmul.f32 %v1454, %v1456
        %v1458 = vsub.f32 1.0, %v1457
        %v1459 = vmul.f32 %v1456, %v1458
        %v1460 = vadd.f32 %v1456, %v1459
        %vm1461 = vweird.f32 %v1454
        %vm1462 = vweird.f32 %v1456
        %vm1463 = vmor %vm1461, %vm1462
        %v1464 = vsel %vm1463, %v1456, %v1460
        %v1465 = vand.u32 2147483647, %v1454
        %vm1466 = vcmp.eq.f32.partialorder %v1465, 8.507059e+37
        %v1467 = vand.u32 %v1454, 2147483648
        %v1468 = vor.u32 1.1754944e-38, %v1467
        %v1469 = vsel %vm1466, %v1468, %v1464
        %v1470 = vmul.f32 1.0, %v1469
        %v1471 = vrcp.pop %v1455
        %v1472 = vmul.f32 %v1455, %v1471
        %v1473 = vsub.f32 1.0, %v1472
        %v1474 = vmul.f32 %v1471, %v1473
        %v1475 = vadd.f32 %v1471, %v1474
        %vm1476 = vweird.f32 %v1455
        %vm1477 = vweird.f32 %v1471
        %vm1478 = vmor %vm1476, %vm1477
        %v1479 = vsel %vm1478, %v1471, %v1475
        %v1480 = vand.u32 2147483647, %v1455
        %vm1481 = vcmp.eq.f32.partialorder %v1480, 8.507059e+37
        %v1482 = vand.u32 %v1455, 2147483648
        %v1483 = vor.u32 1.1754944e-38, %v1482
        %v1484 = vsel %vm1481, %v1483, %v1479
        %v1485 = vmul.f32 1.0, %v1484
        %v1486 = vtanh.pop %v1375
        %v1487 = vtanh.pop %v1376
        %v1488 = vxor.u32 %v1408, 2147483648
        %v1489 = vxor.u32 %v1409, 2147483648
        %v1490 = vmul.f32 %v1488, 1.442695
        %v1491 = vpow.pop %v1490
        %v1492 = vmul.f32 %v1489, 1.442695
        %v1493 = vpow.pop %v1492
        %v1494 = vadd.f32 %v1491, 1.0
        %v1495 = vadd.f32 %v1493, 1.0
        %v1496 = vrcp.pop %v1494
        %v1497 = vmul.f32 %v1494, %v1496
        %v1498 = vsub.f32 1.0, %v1497
        %v1499 = vmul.f32 %v1496, %v1498
        %v1500 = vadd.f32 %v1496, %v1499
        %vm1501 = vweird.f32 %v1494
        %vm1502 = vweird.f32 %v1496
        %vm1503 = vmor %vm1501, %vm1502
        %v1504 = vsel %vm1503, %v1496, %v1500
        %v1505 = vand.u32 2147483647, %v1494
        %vm1506 = vcmp.eq.f32.partialorder %v1505, 8.507059e+37
        %v1507 = vand.u32 %v1494, 2147483648
        %v1508 = vor.u32 1.1754944e-38, %v1507
        %v1509 = vsel %vm1506, %v1508, %v1504
        %v1510 = vmul.f32 1.0, %v1509
        %v1511 = vrcp.pop %v1495
        %v1512 = vmul.f32 %v1495, %v1511
        %v1513 = vsub.f32 1.0, %v1512
        %v1514 = vmul.f32 %v1511, %v1513
        %v1515 = vadd.f32 %v1511, %v1514
        %vm1516 = vweird.f32 %v1495
        %vm1517 = vweird.f32 %v1511
        %vm1518 = vmor %vm1516, %vm1517
        %v1519 = vsel %vm1518, %v1511, %v1515
        %v1520 = vand.u32 2147483647, %v1495
        %vm1521 = vcmp.eq.f32.partialorder %v1520, 8.507059e+37
        %v1522 = vand.u32 %v1495, 2147483648
        %v1523 = vor.u32 1.1754944e-38, %v1522
        %v1524 = vsel %vm1521, %v1523, %v1519
        %v1525 = vmul.f32 1.0, %v1524
        %v1526 = vmul.f32 %v1470, %v1262
        %v1527 = vmul.f32 %v1485, %v1263
        %1530 = vrot.lane.b32.xlu0 %v1486, 64
        %v1531 = vpop.permute.xlu0 %1530
        %1532 = vrot.lane.b32.xlu0 %v1487, 64
        %v1533 = vpop.permute.xlu0 %1532
        %v1536 = vmul.f32 %v1432, %v1531
        %v1537 = vmul.f32 %v1447, %v1533
        %1540 = vrot.lane.b32.xlu0 %v1536, 32
        %v1541 = vpop.permute.xlu0 %1540
        %1542 = vrot.lane.b32.xlu0 %v1537, 32
        %v1543 = vpop.permute.xlu0 %1542
        %v1546 = vadd.f32 %v1526, %v1541
        %v1547 = vadd.f32 %v1527, %v1543
        %v1548 = vtanh.pop %v1546
        %v1549 = vtanh.pop %v1547
        %1552 = vrot.lane.b32.xlu0 %v1548, 64
        %v1553 = vpop.permute.xlu0 %1552
        %1554 = vrot.lane.b32.xlu0 %v1549, 64
        %v1555 = vpop.permute.xlu0 %1554
        %v1558 = vmul.f32 %v1510, %v1553
        %v1559 = vmul.f32 %v1525, %v1555
        %1562 = vrot.lane.b32.xlu0 %v1558, 32
        %v1563 = vpop.permute.xlu0 %1562
        %1564 = vrot.lane.b32.xlu0 %v1559, 32
        %v1565 = vpop.permute.xlu0 %1564
        %1568 = vst.msk [vmem:[#allocation2] sm:$0xff] %vm419, %v1563
        %1569 = vst.msk [vmem:[#allocation2 + $0x8] sm:$0xff] %vm419, %v1565
        %1572 = vrot.lane.b32.xlu0 %v1546, 96
        %v1573 = vpop.permute.xlu0 %1572
        %1574 = vrot.lane.b32.xlu0 %v1547, 96
        %v1575 = vpop.permute.xlu0 %1574
        %1578 = vst.msk [vmem:[#allocation3] sm:$0xff] %vm419, %v1573
        %1579 = vst.msk [vmem:[#allocation3 + $0x8] sm:$0xff] %vm419, %v1575
        %p1580 = scmp.eq.s32.totalorder %s23, 1
        // Predicated region
        $region65: #{tpu_custom_call.1} parent=43 // pred_check
          %p1581 = pneg %p1580
        $region66: #{tpu_custom_call.1} parent=43 // pred_check_branch
          %1583 = sbr.rel (%p1581) target = $region68
        $region67: #{tpu_custom_call.1} parent=43 // pred_region
          %v1584 = vld [vmem:[#allocation10] sm:$0xff]
          %v1585 = vld [vmem:[%s5] sm:$0x1]
          %v1586 = vmul.f32 %v1558, %v1558
          %1588 = vrot.lane.b32.xlu0 %v1586, 32
          %v1589 = vpop.permute.xlu0 %1588
          %v1591 = vsel %vm419, %v1589, 0.0
          %1592 = vadd.xlane.f32.xlu0 %v1591
          %v1593 = vpop.xlane.xlu0 %1592
          %v1594 = vrsqrt.pop %v1593
          %v1595 = vmul.f32 %v1594, %v1593
          %v1596 = vmul.f32 %v1595, %v1594
          %v1597 = vmul.f32 0.5, %v1596
          %v1598 = vsub.f32 1.5, %v1597
          %v1599 = vmul.f32 %v1594, %v1598
          %v1600 = vmul.f32 %v1593, %v1599
          %vm1601 = vcmp.eq.f32.partialorder %v1593, inf
          %v1602 = vsel %vm1601, %v1593, %v1600
          %vm1603 = vcmp.eq.f32.partialorder %v1593, 0.0
          %v1604 = vand.u32 %v1593, 2147483648
          %v1605 = vsel %vm1603, %v1604, %v1602
          %v1606 = vmax.f32 %v1605, 1e-08
          %v1607 = vrcp.pop %v1606
          %v1608 = vmul.f32 %v1606, %v1607
          %v1609 = vsub.f32 1.0, %v1608
          %v1610 = vmul.f32 %v1607, %v1609
          %v1611 = vadd.f32 %v1607, %v1610
          %vm1612 = vweird.f32 %v1606
          %vm1613 = vweird.f32 %v1607
          %vm1614 = vmor %vm1612, %vm1613
          %v1615 = vsel %vm1614, %v1607, %v1611
          %v1616 = vand.u32 2147483647, %v1606
          %vm1617 = vcmp.eq.f32.partialorder %v1616, 8.507059e+37
          %v1618 = vand.u32 %v1606, 2147483648
          %v1619 = vor.u32 1.1754944e-38, %v1618
          %v1620 = vsel %vm1617, %v1619, %v1615
          %v1621 = vmul.f32 %v1558, %v1620
          %1623 = vrot.lane.b32.xlu0 %v1621, 32
          %v1624 = vpop.permute.xlu0 %1623
          %v1625 = vsel %vm419, %v1624, 0
          %1627 = vmatpush.xpose.msra.mxu0 0.0
          %1628 = vmatpush.xpose.msra.mxu0 0.0
          %1629 = vmatpush.xpose.msra.mxu0 0.0
          %1630 = vmatpush.xpose.msra.mxu0 0.0
          %1631 = vmatpush.xpose.msra.mxu0 0.0
          %1632 = vmatpush.xpose.msra.mxu0 0.0
          %1633 = vmatpush.xpose.msra.mxu0 0.0
          %1634 = vmatpush.xpose.msra.mxu0 0.0
          %1635 = vmatpush.xpose.msra.mxu0 0.0
          %1636 = vmatpush.xpose.msra.mxu0 0.0
          %1637 = vmatpush.xpose.msra.mxu0 0.0
          %1638 = vmatpush.xpose.msra.mxu0 0.0
          %1639 = vmatpush.xpose.msra.mxu0 0.0
          %1640 = vmatpush.xpose.msra.mxu0 0.0
          %1641 = vmatpush.xpose.msra.mxu0 0.0
          %1642 = vmatpush.xpose.msra.mxu0 %v1625
          %1643 = vmatmul.f32.gmra.mxu0 %v1625
          %v1644 = vpop.f32.mrf.mxu0
          %v1645 = vadd.f32 0.0, %v1644
          %1646 = vdwg.mxu0
          %v1648 = vperm.slane %v1585, 0
          %vm1650 = vcmask 64512
          %v1652 = vsel %vm1650, %v1645, 0
          %1654 = vmatpush.msra.mxu0 0.0
          %1655 = vmatpush.msra.mxu0 0.0
          %1656 = vmatpush.msra.mxu0 0.0
          %1657 = vmatpush.msra.mxu0 0.0
          %1658 = vmatpush.msra.mxu0 0.0
          %1659 = vmatpush.msra.mxu0 0.0
          %1660 = vmatpush.msra.mxu0 0.0
          %1661 = vmatpush.msra.mxu0 0.0
          %1662 = vmatpush.msra.mxu0 0.0
          %1663 = vmatpush.msra.mxu0 0.0
          %1664 = vmatpush.msra.mxu0 0.0
          %1665 = vmatpush.msra.mxu0 0.0
          %1666 = vmatpush.msra.mxu0 0.0
          %1667 = vmatpush.msra.mxu0 0.0
          %1668 = vmatpush.msra.mxu0 0.0
          %1669 = vmatpush.msra.mxu0 %v1584
          %1670 = vmatmul.f32.gmra.mxu0 %v1652
          %v1671 = vpop.f32.mrf.mxu0
          %v1672 = vadd.f32 %v1648, %v1671
          %1673 = vdwg.mxu0
          %v1674 = vxor.u32 %v1672, 2147483648
          %v1675 = vmul.f32 %v1674, 1.442695
          %v1676 = vpow.pop %v1675
          %v1677 = vadd.f32 %v1676, 1.0
          %v1678 = vrcp.pop %v1677
          %v1679 = vmul.f32 %v1677, %v1678
          %v1680 = vsub.f32 1.0, %v1679
          %v1681 = vmul.f32 %v1678, %v1680
          %v1682 = vadd.f32 %v1678, %v1681
          %vm1683 = vweird.f32 %v1677
          %vm1684 = vweird.f32 %v1678
          %vm1685 = vmor %vm1683, %vm1684
          %v1686 = vsel %vm1685, %v1678, %v1682
          %v1687 = vand.u32 2147483647, %v1677
          %vm1688 = vcmp.eq.f32.partialorder %v1687, 8.507059e+37
          %v1689 = vand.u32 %v1677, 2147483648
          %v1690 = vor.u32 1.1754944e-38, %v1689
          %v1691 = vsel %vm1688, %v1690, %v1686
          %v1692 = vmul.f32 1.0, %v1691
          %1693 = vst.msk [vmem:[#allocation12] sm:$0xff] %vm1650, %v1692
          %v1694 = vmul.f32 %v1559, %v1559
          %1696 = vrot.lane.b32.xlu0 %v1694, 32
          %v1697 = vpop.permute.xlu0 %1696
          %v1699 = vsel %vm419, %v1697, 0.0
          %1700 = vadd.xlane.f32.xlu0 %v1699
          %v1701 = vpop.xlane.xlu0 %1700
          %v1702 = vrsqrt.pop %v1701
          %v1703 = vmul.f32 %v1702, %v1701
          %v1704 = vmul.f32 %v1703, %v1702
          %v1705 = vmul.f32 0.5, %v1704
          %v1706 = vsub.f32 1.5, %v1705
          %v1707 = vmul.f32 %v1702, %v1706
          %v1708 = vmul.f32 %v1701, %v1707
          %vm1709 = vcmp.eq.f32.partialorder %v1701, inf
          %v1710 = vsel %vm1709, %v1701, %v1708
          %vm1711 = vcmp.eq.f32.partialorder %v1701, 0.0
          %v1712 = vand.u32 %v1701, 2147483648
          %v1713 = vsel %vm1711, %v1712, %v1710
          %v1714 = vmax.f32 %v1713, 1e-08
          %v1715 = vrcp.pop %v1714
          %v1716 = vmul.f32 %v1714, %v1715
          %v1717 = vsub.f32 1.0, %v1716
          %v1718 = vmul.f32 %v1715, %v1717
          %v1719 = vadd.f32 %v1715, %v1718
          %vm1720 = vweird.f32 %v1714
          %vm1721 = vweird.f32 %v1715
          %vm1722 = vmor %vm1720, %vm1721
          %v1723 = vsel %vm1722, %v1715, %v1719
          %v1724 = vand.u32 2147483647, %v1714
          %vm1725 = vcmp.eq.f32.partialorder %v1724, 8.507059e+37
          %v1726 = vand.u32 %v1714, 2147483648
          %v1727 = vor.u32 1.1754944e-38, %v1726
          %v1728 = vsel %vm1725, %v1727, %v1723
          %v1729 = vmul.f32 %v1559, %v1728
          %1731 = vrot.lane.b32.xlu0 %v1729, 32
          %v1732 = vpop.permute.xlu0 %1731
          %v1733 = vsel %vm419, %v1732, 0
          %1735 = vmatpush.xpose.msra.mxu0 0.0
          %1736 = vmatpush.xpose.msra.mxu0 0.0
          %1737 = vmatpush.xpose.msra.mxu0 0.0
          %1738 = vmatpush.xpose.msra.mxu0 0.0
          %1739 = vmatpush.xpose.msra.mxu0 0.0
          %1740 = vmatpush.xpose.msra.mxu0 0.0
          %1741 = vmatpush.xpose.msra.mxu0 0.0
          %1742 = vmatpush.xpose.msra.mxu0 0.0
          %1743 = vmatpush.xpose.msra.mxu0 0.0
          %1744 = vmatpush.xpose.msra.mxu0 0.0
          %1745 = vmatpush.xpose.msra.mxu0 0.0
          %1746 = vmatpush.xpose.msra.mxu0 0.0
          %1747 = vmatpush.xpose.msra.mxu0 0.0
          %1748 = vmatpush.xpose.msra.mxu0 0.0
          %1749 = vmatpush.xpose.msra.mxu0 0.0
          %1750 = vmatpush.xpose.msra.mxu0 %v1733
          %1751 = vmatmul.f32.gmra.mxu0 %v1733
          %v1752 = vpop.f32.mrf.mxu0
          %v1753 = vadd.f32 0.0, %v1752
          %1754 = vdwg.mxu0
          %v1756 = vsel %vm1650, %v1753, 0
          %1758 = vmatpush.msra.mxu0 0.0
          %1759 = vmatpush.msra.mxu0 0.0
          %1760 = vmatpush.msra.mxu0 0.0
          %1761 = vmatpush.msra.mxu0 0.0
          %1762 = vmatpush.msra.mxu0 0.0
          %1763 = vmatpush.msra.mxu0 0.0
          %1764 = vmatpush.msra.mxu0 0.0
          %1765 = vmatpush.msra.mxu0 0.0
          %1766 = vmatpush.msra.mxu0 0.0
          %1767 = vmatpush.msra.mxu0 0.0
          %1768 = vmatpush.msra.mxu0 0.0
          %1769 = vmatpush.msra.mxu0 0.0
          %1770 = vmatpush.msra.mxu0 0.0
          %1771 = vmatpush.msra.mxu0 0.0
          %1772 = vmatpush.msra.mxu0 0.0
          %1773 = vmatpush.msra.mxu0 %v1584
          %1774 = vmatmul.f32.gmra.mxu0 %v1756
          %v1775 = vpop.f32.mrf.mxu0
          %v1776 = vadd.f32 %v1648, %v1775
          %1777 = vdwg.mxu0
          %v1778 = vxor.u32 %v1776, 2147483648
          %v1779 = vmul.f32 %v1778, 1.442695
          %v1780 = vpow.pop %v1779
          %v1781 = vadd.f32 %v1780, 1.0
          %v1782 = vrcp.pop %v1781
          %v1783 = vmul.f32 %v1781, %v1782
          %v1784 = vsub.f32 1.0, %v1783
          %v1785 = vmul.f32 %v1782, %v1784
          %v1786 = vadd.f32 %v1782, %v1785
          %vm1787 = vweird.f32 %v1781
          %vm1788 = vweird.f32 %v1782
          %vm1789 = vmor %vm1787, %vm1788
          %v1790 = vsel %vm1789, %v1782, %v1786
          %v1791 = vand.u32 2147483647, %v1781
          %vm1792 = vcmp.eq.f32.partialorder %v1791, 8.507059e+37
          %v1793 = vand.u32 %v1781, 2147483648
          %v1794 = vor.u32 1.1754944e-38, %v1793
          %v1795 = vsel %vm1792, %v1794, %v1790
          %v1796 = vmul.f32 1.0, %v1795
          %s1797 = scalar_lea.vmem [#allocation12], 8
          %1798 = vst.msk [vmem:[%s1797] sm:$0xff] %vm1650, %v1796
        $region68: #{tpu_custom_call.1} parent=43 // pred_fallthru
          _
        // Predicated region
        $region69: #{tpu_custom_call.1} parent=43 // pred_check
          %p1799 = pneg %p167
        $region70: #{tpu_custom_call.1} parent=43 // pred_check_branch
          %1801 = sbr.rel (%p1799) target = $region72
        $region71: #{tpu_custom_call.1} parent=43 // pred_region
          %1803 = vsyncadd [#allocation6], 0
          %s1804 = sshll.u32 [#allocation12], 4
          %s1805 = int_to_ptr.vmem [resolvable:$true] %s1804
          %s1806 = sshll.u32 %s6, 4
          %s1807 = int_to_ptr.hbm [resolvable:$true] %s1806
          %1812 = dma.vmem_to_hbm [thread:$0]  %s1805, 256, %s1807, [#allocation6], 128, 128, 8
        $region72: #{tpu_custom_call.1} parent=43 // pred_fallthru
          _
        // Predicated region
        $region73: #{tpu_custom_call.1} parent=43 // pred_check
          %p1813 = pneg %p167
        $region74: #{tpu_custom_call.1} parent=43 // pred_check_branch
          %1815 = sbr.rel (%p1813) target = $region76
        $region75: #{tpu_custom_call.1} parent=43 // pred_region
          %1817 = dma.done [#allocation6], 256
        $region76: #{tpu_custom_call.1} parent=43 // pred_fallthru
          _
      $region44: #{tpu_custom_call.1} parent=5 // pred_fallthru
        _
      %p1818 = scmp.le.s32.totalorder 2, %s18
      // Predicated region
      $region77: #{tpu_custom_call.1} parent=5 // pred_check
        %p1819 = pneg %p1818
      $region78: #{tpu_custom_call.1} parent=5 // pred_check_branch
        %1821 = sbr.rel (%p1819) target = $region80
      $region79: #{tpu_custom_call.1} parent=5 // pred_region
        %s1822 = ssub.s32 %s18, 2
      $region80: #{tpu_custom_call.1} parent=5 // pred_fallthru
        _
    $region6: #{tpu_custom_call.1} parent=1 // loop_footer
      %s22 = sadd.s32 1, %s18
    $region7: #{tpu_custom_call.1} parent=1 // loop_footer_branch
      %17 = sbr.rel target = $region3
    $region8: #{tpu_custom_call.1} parent=1 // loop_exit
      _
    %1823 = vsyncpa [#allocation5], 1
    %s1824 = scalar_lea.sflag [#allocation5], 1
    %1825 = vsyncpa %s1824, 1
    %1826 = vsyncpa [#allocation8], 1
    %1827 = vsyncpa [#allocation11], 1
    %1828 = vsyncpa [#allocation6], 1
    %s1829 = scalar_lea.sflag [#allocation6], 1
    %1830 = vsyncpa %s1829, 1

</llo_original>
